<compile_context>
chip_gen: v6e
topology: v6e:2x2x1
jax: 0.10.0
libtpu: 0.0.40
codegen_flags: <defaults>
</compile_context>

<pallas_src>
import functools

import jax
import jax.numpy as jnp
import numpy as np
from jax import lax
from jax.experimental import pallas as pl
from jax.experimental.pallas import tpu as pltpu


def _mhsa_kernel(start_ref, end_ref,                          # scalar prefetch (SMEM)
                 x_ref, wqkv_ref, bqkv_ref, wfc_ref, bfc_ref,  # inputs (VMEM)
                 out_ref,                                      # output (VMEM)
                 k_scr, v_scr, m_scr, l_scr, acc_scr,          # VMEM scratch
                 *, num_heads, scale, kv_block):
    b = pl.program_id(0)
    n = x_ref.shape[1]
    d_model = wfc_ref.shape[0]
    dk = d_model // num_heads
    num_kv = n // kv_block
    cdt = x_ref.dtype                       # MXU operand dtype (f32 or bf16)

    start = start_ref[b]
    end = end_ref[b]

    x = x_ref[0]                                                # (n, dim_in)

    # Fused Q|K|V projection: one MXU matmul, f32 accumulation, fused bias.
    qkv = jnp.dot(x, wqkv_ref[...], preferred_element_type=jnp.float32)
    qkv = qkv + bqkv_ref[...]                                   # (n, 3*d_model)

    # 1/sqrt(dk) folded into q; K/V stashed in VMEM scratch (operand dtype).
    q = (qkv[:, 0:d_model] * scale).astype(cdt)                 # (n, d_model)
    k_scr[...] = qkv[:, d_model:2 * d_model].astype(cdt)
    v_scr[...] = qkv[:, 2 * d_model:3 * d_model].astype(cdt)

    # Per-head static lane slices of q, hoisted out of the KV loop.
    q_heads = [q[:, h * dk:(h + 1) * dk] for h in range(num_heads)]

    # Online-softmax state (re-initialized every grid step / batch row).
    m_scr[...] = jnp.full(m_scr.shape, -1e30, jnp.float32)   # finite sentinel
    l_scr[...] = jnp.zeros(l_scr.shape, jnp.float32)
    acc_scr[...] = jnp.zeros(acc_scr.shape, jnp.float32)

    # Row predicate of the span mask (KV-loop invariant).
    rows = lax.broadcasted_iota(jnp.int32, (n, 1), 0)
    row_in = (rows >= start) & (rows < end)                     # (n, 1)
    neg = jnp.float32(-10000000000.0)

    @pl.loop(0, num_kv)
    def _(step):
        off = step * kv_block
        off_hint = pl.multiple_of(off, kv_block)
        k_t = k_scr[pl.ds(off_hint, kv_block), :]               # (kv_block, d_model)
        v_t = v_scr[pl.ds(off_hint, kv_block), :]

        cols = off + lax.broadcasted_iota(jnp.int32, (1, kv_block), 1)
        col_in = (cols >= start) & (cols < end)                 # (1, kv_block)
        add_mask = jnp.where(row_in & col_in, jnp.float32(0.0), neg)  # (n, kv_block)

        for h in range(num_heads):                              # small static unroll
            sl = slice(h * dk, (h + 1) * dk)
            # q_h @ k_h^T: contract last dims of both (no explicit transpose op).
            s = lax.dot_general(q_heads[h], k_t[:, sl],
                                (((1,), (1,)), ((), ())),
                                preferred_element_type=jnp.float32)   # (n, kv_block)
            s = s + add_mask

            m_prev = m_scr[h]                                   # (n, 1)
            m_new = jnp.maximum(m_prev, jnp.max(s, axis=-1, keepdims=True))
            alpha = jnp.exp(m_prev - m_new)
            p = jnp.exp(s - m_new)                              # (n, kv_block)

            l_scr[h] = alpha * l_scr[h] + jnp.sum(p, axis=-1, keepdims=True)
            pv = jnp.dot(p.astype(cdt), v_t[:, sl],
                         preferred_element_type=jnp.float32)    # (n, dk)
            acc_scr[:, sl] = alpha * acc_scr[:, sl] + pv
            m_scr[h] = m_new

    # Normalize each head's slab columns (EUP approx reciprocal), then project.
    for h in range(num_heads):
        sl = slice(h * dk, (h + 1) * dk)
        acc_scr[:, sl] = acc_scr[:, sl] * pl.reciprocal(l_scr[h], approx=True)

    out = jnp.dot(acc_scr[...].astype(cdt), wfc_ref[...],
                  preferred_element_type=jnp.float32) + bfc_ref[...]
    out_ref[0] = out.astype(out_ref.dtype)


def mhsa_pallas(x, attention_mask, params, *, num_heads, kv_block=None,
                compute_dtype=jnp.float32, out_dtype=jnp.float32,
                vmem_limit_bytes=None):
    batch, n, dim_in = x.shape
    d_model = params["wq"].shape[1]
    assert d_model % num_heads == 0, "d_model must be multiple of num_heads"
    dk = d_model // num_heads
    scale = 1.0 / float(np.sqrt(dk))

    if kv_block is None:
        kv_block = n if n <= 512 else 512
    assert n % kv_block == 0, "n must be divisible by kv_block"
    assert kv_block == n or kv_block % 8 == 0, "kv_block must be a multiple of 8"

    # start = first True index, end = last True index (used as EXCLUSIVE bound),
    # matching torch.where(attention_mask[i])[0][0] / [-1].
    mask_i = attention_mask.astype(jnp.int32)
    start = jnp.argmax(mask_i, axis=1).astype(jnp.int32)
    end = (n - 1 - jnp.argmax(mask_i[:, ::-1], axis=1)).astype(jnp.int32)

    cdt = compute_dtype
    xc = x.astype(cdt)
    # Fused QKV weight/bias (weights pre-transposed to (in, out): y = x @ W + b).
    wqkv = jnp.concatenate([params["wq"], params["wk"], params["wv"]],
                           axis=1).astype(cdt)                   # (dim_in, 3*d_model)
    bqkv = jnp.concatenate([params["bq"], params["bk"], params["bv"]],
                           axis=1).astype(jnp.float32)           # (1, 3*d_model)
    wfc = params["wfc"].astype(cdt)
    bfc = params["bfc"].astype(jnp.float32)

    kernel = functools.partial(_mhsa_kernel, num_heads=num_heads, scale=scale,
                               kv_block=kv_block)

    in_bytes = jnp.dtype(cdt).itemsize
    out_bytes = jnp.dtype(out_dtype).itemsize
    flops = (2 * batch * n * dim_in * 3 * d_model          # fused qkv projection
             + 2 * batch * num_heads * n * n * dk * 2      # scores + p @ v
             + 2 * batch * n * d_model * d_model)          # output projection
    bytes_accessed = (batch * n * dim_in * in_bytes                        # x
                      + (3 * dim_in * d_model + d_model * d_model) * in_bytes
                      + 4 * d_model * 4                                    # biases
                      + batch * n * d_model * out_bytes)                   # output
    cost = pl.CostEstimate(flops=int(flops),
                           transcendentals=int(batch * num_heads * n * n),
                           bytes_accessed=int(bytes_accessed))

    grid_spec = pltpu.PrefetchScalarGridSpec(
        num_scalar_prefetch=2,
        grid=(batch,),
        in_specs=[
            pl.BlockSpec((1, n, dim_in), lambda b, s, e: (b, 0, 0)),       # x
            pl.BlockSpec((dim_in, 3 * d_model), lambda b, s, e: (0, 0)),   # wqkv
            pl.BlockSpec((1, 3 * d_model), lambda b, s, e: (0, 0)),        # bqkv
            pl.BlockSpec((d_model, d_model), lambda b, s, e: (0, 0)),      # wfc
            pl.BlockSpec((1, d_model), lambda b, s, e: (0, 0)),            # bfc
        ],
        out_specs=pl.BlockSpec((1, n, d_model), lambda b, s, e: (b, 0, 0)),
        scratch_shapes=[
            pltpu.VMEM((n, d_model), cdt),                  # k slab
            pltpu.VMEM((n, d_model), cdt),                  # v slab
            pltpu.VMEM((num_heads, n, 1), jnp.float32),     # online-softmax m
            pltpu.VMEM((num_heads, n, 1), jnp.float32),     # online-softmax l
            pltpu.VMEM((n, d_model), jnp.float32),          # attention acc slab
        ],
    )

    return pl.pallas_call(
        kernel,
        out_shape=jax.ShapeDtypeStruct((batch, n, d_model), out_dtype),
        grid_spec=grid_spec,
        cost_estimate=cost,
        compiler_params=pltpu.CompilerParams(
            dimension_semantics=("parallel",),
            vmem_limit_bytes=vmem_limit_bytes),
    )(start, end, xc, wqkv, bqkv, wfc, bfc)


def mhsa_reference(x, attention_mask, params, *, num_heads):
    """Pure-JAX reference replicating the PyTorch forward exactly (f32)."""
    batch, n, _ = x.shape
    d_model = params["wq"].shape[1]
    dk = d_model // num_heads
    scale = 1.0 / float(np.sqrt(dk))

    def proj(w, b):
        return x @ w + b[0]

    q = proj(params["wq"], params["bq"]).reshape(batch, n, num_heads, dk).transpose(0, 2, 1, 3)
    k = proj(params["wk"], params["bk"]).reshape(batch, n, num_heads, dk).transpose(0, 2, 1, 3)
    v = proj(params["wv"], params["bv"]).reshape(batch, n, num_heads, dk).transpose(0, 2, 1, 3)
    dist = jnp.einsum("bhqd,bhkd->bhqk", q, k) * scale

    masks = []
    am = np.asarray(attention_mask)
    for i in range(batch):
        idx = np.where(am[i])[0]
        s, e = int(idx[0]), int(idx[-1])
        m = np.full((1, n, n), -10000000000.0, np.float32)
        m[0, s:e, s:e] = 0.0
        masks.append(m)
    dist = dist + jnp.asarray(np.stack(masks))
    dist = jax.nn.softmax(dist, axis=-1)
    att = jnp.einsum("bhqk,bhkd->bhqd", dist, v).transpose(0, 2, 1, 3).reshape(batch, n, d_model)
    return att @ params["wfc"] + params["bfc"][0]


def init_params(key, dim_in, d_model):
    ks = jax.random.split(key, 8)
    sd = 0.1
    return {
        "wq": sd * jax.random.normal(ks[0], (dim_in, d_model), jnp.float32),
        "bq": sd * jax.random.normal(ks[1], (1, d_model), jnp.float32),
        "wk": sd * jax.random.normal(ks[2], (dim_in, d_model), jnp.float32),
        "bk": sd * jax.random.normal(ks[3], (1, d_model), jnp.float32),
        "wv": sd * jax.random.normal(ks[4], (dim_in, d_model), jnp.float32),
        "bv": sd * jax.random.normal(ks[5], (1, d_model), jnp.float32),
        "wfc": sd * jax.random.normal(ks[6], (d_model, d_model), jnp.float32),
        "bfc": sd * jax.random.normal(ks[7], (1, d_model), jnp.float32),
    }


if __name__ == "__main__":
    # Small but lane-dense shapes: dim_in = d_model = 128 (multiple of 128).
    batch, n, dim_in, d_model, num_heads = 2, 16, 128, 128, 4
    kv_block = 8   # two KV tiles -> exercises the online-softmax path

    key = jax.random.PRNGKey(0)
    kx, kp = jax.random.split(key)
    x = jax.random.normal(kx, (batch, n, dim_in), jnp.float32)
    params = init_params(kp, dim_in, d_model)

    # attention_mask: batch 0 valid span indices 2..12, batch 1 fully valid.
    am = np.zeros((batch, n), np.int32)
    am[0, 2:13] = 1
    am[1, :] = 1
    attention_mask = jnp.asarray(am)

    ref = mhsa_reference(x, attention_mask, params, num_heads=num_heads)

    # f32 path (differs from the reference only by the EUP approx reciprocal
    # and the online-softmax accumulation order).
    out_f32 = jax.block_until_ready(
        mhsa_pallas(x, attention_mask, params, num_heads=num_heads,
                    kv_block=kv_block, compute_dtype=jnp.float32,
                    out_dtype=jnp.float32))
    np.testing.assert_allclose(np.asarray(out_f32), np.asarray(ref),
                               rtol=5e-3, atol=5e-3)

    # bf16 operands + bf16 output (MXU-native on v6e/v7x; mask / softmax /
    # accumulation stay in f32).
    out_bf16 = jax.block_until_ready(
        mhsa_pallas(x, attention_mask, params, num_heads=num_heads,
                    kv_block=kv_block, compute_dtype=jnp.bfloat16,
                    out_dtype=jnp.bfloat16))
    np.testing.assert_allclose(np.asarray(out_bf16.astype(jnp.float32)),
                               np.asarray(ref), rtol=1e-1, atol=1e-1)

    print("KERNEL_OK")
</pallas_src>

<mosaic_0001>
module attributes {stable_mosaic.version = 11 : i64} {
  func.func @_mhsa_kernel(%arg0: i32, %arg1: memref<2xi32, #tpu.memory_space<smem>>, %arg2: memref<2xi32, #tpu.memory_space<smem>>, %arg3: memref<1x16x128xf32, #tpu.memory_space<vmem>>, %arg4: memref<128x384xf32, #tpu.memory_space<vmem>>, %arg5: memref<1x384xf32, #tpu.memory_space<vmem>>, %arg6: memref<128x128xf32, #tpu.memory_space<vmem>>, %arg7: memref<1x128xf32, #tpu.memory_space<vmem>>, %arg8: memref<1x16x128xf32, #tpu.memory_space<vmem>>, %arg9: memref<16x128xf32, #tpu.memory_space<vmem>>, %arg10: memref<16x128xf32, #tpu.memory_space<vmem>>, %arg11: memref<4x16x1xf32, #tpu.memory_space<vmem>>, %arg12: memref<4x16x1xf32, #tpu.memory_space<vmem>>, %arg13: memref<16x128xf32, #tpu.memory_space<vmem>>) attributes {dimension_semantics = [#tpu.dimension_semantics<parallel>], iteration_bounds = array<i64: 2>, scalar_prefetch = 2 : i64, scratch_operands = 5 : i64, tpu.core_type = #tpu.core_type<tc>, window_params = [{transform_indices = @transform_0, window_bounds = array<i64: 1, 16, 128>}, {pipeline_mode = #tpu.pipeline_mode<synchronous>, transform_indices = @transform_1, window_bounds = array<i64: 128, 384>}, {pipeline_mode = #tpu.pipeline_mode<synchronous>, transform_indices = @transform_2, window_bounds = array<i64: 1, 384>}, {pipeline_mode = #tpu.pipeline_mode<synchronous>, transform_indices = @transform_3, window_bounds = array<i64: 128, 128>}, {pipeline_mode = #tpu.pipeline_mode<synchronous>, transform_indices = @transform_4, window_bounds = array<i64: 1, 128>}, {transform_indices = @transform_5, window_bounds = array<i64: 1, 16, 128>}]} {
    %0 = arith.index_cast %arg0 : i32 to index
    %1 = memref.load %arg1[%0] : memref<2xi32, #tpu.memory_space<smem>>
    %2 = arith.index_cast %arg0 : i32 to index
    %3 = memref.load %arg2[%2] : memref<2xi32, #tpu.memory_space<smem>>
    %c0 = arith.constant 0 : index
    %c0_0 = arith.constant 0 : index
    %c0_1 = arith.constant 0 : index
    %4 = vector.load %arg3[%c0, %c0_0, %c0_1] : memref<1x16x128xf32, #tpu.memory_space<vmem>>, vector<1x16x128xf32>
    %5 = vector.shape_cast %4 : vector<1x16x128xf32> to vector<16x128xf32>
    %c0_2 = arith.constant 0 : index
    %c0_3 = arith.constant 0 : index
    %6 = vector.load %arg4[%c0_2, %c0_3] : memref<128x384xf32, #tpu.memory_space<vmem>>, vector<128x384xf32>
    %cst = arith.constant dense<0.000000e+00> : vector<16x384xf32>
    %7 = tpu.matmul %5, %6, %cst {dimension_numbers = #tpu.dot_dimension_numbers<[1], [0], [0], [1], [0, 0, 1, 1], [], []>} : vector<16x128xf32>, vector<128x384xf32>, vector<16x384xf32> -> vector<16x384xf32>
    %c0_4 = arith.constant 0 : index
    %c0_5 = arith.constant 0 : index
    %8 = vector.load %arg5[%c0_4, %c0_5] : memref<1x384xf32, #tpu.memory_space<vmem>>, vector<1x384xf32>
    %9 = vector.broadcast %8 : vector<1x384xf32> to vector<16x384xf32>
    %10 = arith.addf %7, %9 : vector<16x384xf32>
    %11 = vector.extract_strided_slice %10 {offsets = [0, 0], sizes = [16, 128], strides = [1, 1]} : vector<16x384xf32> to vector<16x128xf32>
    %cst_6 = arith.constant 0.176776692 : f32
    %12 = vector.broadcast %cst_6 : f32 to vector<16x128xf32>
    %13 = arith.mulf %11, %12 : vector<16x128xf32>
    %14 = vector.extract_strided_slice %10 {offsets = [0, 128], sizes = [16, 128], strides = [1, 1]} : vector<16x384xf32> to vector<16x128xf32>
    %c0_7 = arith.constant 0 : index
    %c0_8 = arith.constant 0 : index
    %15 = vector.load %arg9[%c0_7, %c0_8] : memref<16x128xf32, #tpu.memory_space<vmem>>, vector<16x128xf32>
    tpu.vector_store %arg9[%c0_7, %c0_8], %14 {strides = array<i32>} : memref<16x128xf32, #tpu.memory_space<vmem>>, vector<16x128xf32>,
    %16 = vector.extract_strided_slice %10 {offsets = [0, 256], sizes = [16, 128], strides = [1, 1]} : vector<16x384xf32> to vector<16x128xf32>
    %c0_9 = arith.constant 0 : index
    %c0_10 = arith.constant 0 : index
    %17 = vector.load %arg10[%c0_9, %c0_10] : memref<16x128xf32, #tpu.memory_space<vmem>>, vector<16x128xf32>
    tpu.vector_store %arg10[%c0_9, %c0_10], %16 {strides = array<i32>} : memref<16x128xf32, #tpu.memory_space<vmem>>, vector<16x128xf32>,
    %18 = vector.extract_strided_slice %13 {offsets = [0, 0], sizes = [16, 32], strides = [1, 1]} : vector<16x128xf32> to vector<16x32xf32>
    %19 = vector.extract_strided_slice %13 {offsets = [0, 32], sizes = [16, 32], strides = [1, 1]} : vector<16x128xf32> to vector<16x32xf32>
    %20 = vector.extract_strided_slice %13 {offsets = [0, 64], sizes = [16, 32], strides = [1, 1]} : vector<16x128xf32> to vector<16x32xf32>
    %21 = vector.extract_strided_slice %13 {offsets = [0, 96], sizes = [16, 32], strides = [1, 1]} : vector<16x128xf32> to vector<16x32xf32>
    %cst_11 = arith.constant -1.000000e+30 : f32
    %22 = vector.broadcast %cst_11 : f32 to vector<4x16x1xf32>
    %c0_12 = arith.constant 0 : index
    %c0_13 = arith.constant 0 : index
    %c0_14 = arith.constant 0 : index
    %23 = vector.load %arg11[%c0_12, %c0_13, %c0_14] : memref<4x16x1xf32, #tpu.memory_space<vmem>>, vector<4x16x1xf32>
    tpu.vector_store %arg11[%c0_12, %c0_13, %c0_14], %22 {strides = array<i32>} : memref<4x16x1xf32, #tpu.memory_space<vmem>>, vector<4x16x1xf32>,
    %cst_15 = arith.constant 0.000000e+00 : f32
    %24 = vector.broadcast %cst_15 : f32 to vector<4x16x1xf32>
    %c0_16 = arith.constant 0 : index
    %c0_17 = arith.constant 0 : index
    %c0_18 = arith.constant 0 : index
    %25 = vector.load %arg12[%c0_16, %c0_17, %c0_18] : memref<4x16x1xf32, #tpu.memory_space<vmem>>, vector<4x16x1xf32>
    tpu.vector_store %arg12[%c0_16, %c0_17, %c0_18], %24 {strides = array<i32>} : memref<4x16x1xf32, #tpu.memory_space<vmem>>, vector<4x16x1xf32>,
    %cst_19 = arith.constant 0.000000e+00 : f32
    %26 = vector.broadcast %cst_19 : f32 to vector<16x128xf32>
    %c0_20 = arith.constant 0 : index
    %c0_21 = arith.constant 0 : index
    %27 = vector.load %arg13[%c0_20, %c0_21] : memref<16x128xf32, #tpu.memory_space<vmem>>, vector<16x128xf32>
    tpu.vector_store %arg13[%c0_20, %c0_21], %26 {strides = array<i32>} : memref<16x128xf32, #tpu.memory_space<vmem>>, vector<16x128xf32>,
    %28 = tpu.iota {dimensions = array<i32: 0>} : vector<16x1xi32>
    %29 = vector.broadcast %1 : i32 to vector<16x1xi32>
    %30 = arith.cmpi sge, %28, %29 : vector<16x1xi32>
    %31 = vector.broadcast %3 : i32 to vector<16x1xi32>
    %32 = arith.cmpi slt, %28, %31 : vector<16x1xi32>
    %33 = arith.andi %30, %32 : vector<16x1xi1>
    %cst_22 = arith.constant -1.000000e+10 : f32
    %c0_i32 = arith.constant 0 : i32
    %c2_i32 = arith.constant 2 : i32
    %34 = arith.addi %c0_i32, %c2_i32 : i32
    %c1_i32 = arith.constant 1 : i32
    scf.for %arg14 = %c0_i32 to %34 step %c1_i32  : i32 {
      %c1_i32_56 = arith.constant 1 : i32
      %72 = arith.muli %arg14, %c1_i32_56 : i32
      %c0_i32_57 = arith.constant 0 : i32
      %73 = arith.addi %c0_i32_57, %72 : i32
      %c8_i32 = arith.constant 8 : i32
      %74 = arith.muli %73, %c8_i32 : i32
      %75 = tpu.assume_multiple %74, 8 : i32
      %76 = arith.index_cast %75 : i32 to index
      %c0_58 = arith.constant 0 : index
      %77 = vector.load %arg9[%76, %c0_58] : memref<16x128xf32, #tpu.memory_space<vmem>>, vector<8x128xf32>
      %78 = arith.index_cast %75 : i32 to index
      %c0_59 = arith.constant 0 : index
      %79 = vector.load %arg10[%78, %c0_59] : memref<16x128xf32, #tpu.memory_space<vmem>>, vector<8x128xf32>
      %80 = tpu.iota {dimensions = array<i32: 1>} : vector<1x8xi32>
      %81 = vector.broadcast %74 : i32 to vector<1x8xi32>
      %82 = arith.addi %81, %80 : vector<1x8xi32>
      %83 = vector.broadcast %1 : i32 to vector<1x8xi32>
      %84 = arith.cmpi sge, %82, %83 : vector<1x8xi32>
      %85 = vector.broadcast %3 : i32 to vector<1x8xi32>
      %86 = arith.cmpi slt, %82, %85 : vector<1x8xi32>
      %87 = arith.andi %84, %86 : vector<1x8xi1>
      %88 = vector.broadcast %33 : vector<16x1xi1> to vector<16x8xi1>
      %89 = vector.broadcast %87 : vector<1x8xi1> to vector<16x8xi1>
      %90 = arith.andi %88, %89 : vector<16x8xi1>
      %cst_60 = arith.constant 0.000000e+00 : f32
      %91 = vector.broadcast %cst_60 : f32 to vector<16x8xf32>
      %92 = vector.broadcast %cst_22 : f32 to vector<16x8xf32>
      %93 = arith.select %90, %91, %92 : vector<16x8xi1>, vector<16x8xf32>
      %94 = vector.extract_strided_slice %77 {offsets = [0, 0], sizes = [8, 32], strides = [1, 1]} : vector<8x128xf32> to vector<8x32xf32>
      %cst_61 = arith.constant dense<0.000000e+00> : vector<16x8xf32>
      %95 = tpu.matmul %18, %94, %cst_61 {dimension_numbers = #tpu.dot_dimension_numbers<[1], [1], [0], [0], [0, 0, 1, 0], [], []>} : vector<16x32xf32>, vector<8x32xf32>, vector<16x8xf32> -> vector<16x8xf32>
      %96 = arith.addf %95, %93 : vector<16x8xf32>
      %c0_62 = arith.constant 0 : index
      %c0_63 = arith.constant 0 : index
      %c0_64 = arith.constant 0 : index
      %97 = vector.load %arg11[%c0_62, %c0_63, %c0_64] : memref<4x16x1xf32, #tpu.memory_space<vmem>>, vector<1x16x1xf32>
      %98 = vector.shape_cast %97 : vector<1x16x1xf32> to vector<16x1xf32>
      %cst_65 = arith.constant dense<0xFF800000> : vector<16xf32>
      %99 = vector.multi_reduction <maximumf>, %96, %cst_65 [1] : vector<16x8xf32> to vector<16xf32>
      %100 = vector.shape_cast %99 : vector<16xf32> to vector<16x1xf32>
      %101 = arith.maximumf %98, %100 : vector<16x1xf32>
      %102 = arith.subf %98, %101 : vector<16x1xf32>
      %103 = math.exp %102 : vector<16x1xf32>
      %104 = vector.broadcast %101 : vector<16x1xf32> to vector<16x8xf32>
      %105 = arith.subf %96, %104 : vector<16x8xf32>
      %106 = math.exp %105 : vector<16x8xf32>
      %c0_66 = arith.constant 0 : index
      %c0_67 = arith.constant 0 : index
      %c0_68 = arith.constant 0 : index
      %107 = vector.load %arg12[%c0_66, %c0_67, %c0_68] : memref<4x16x1xf32, #tpu.memory_space<vmem>>, vector<1x16x1xf32>
      %108 = vector.shape_cast %107 : vector<1x16x1xf32> to vector<16x1xf32>
      %109 = arith.mulf %103, %108 : vector<16x1xf32>
      %cst_69 = arith.constant dense<0.000000e+00> : vector<16xf32>
      %110 = vector.multi_reduction <add>, %106, %cst_69 [1] : vector<16x8xf32> to vector<16xf32>
      %111 = vector.shape_cast %110 : vector<16xf32> to vector<16x1xf32>
      %112 = arith.addf %109, %111 : vector<16x1xf32>
      %c0_70 = arith.constant 0 : index
      %c0_71 = arith.constant 0 : index
      %c0_72 = arith.constant 0 : index
      %113 = vector.load %arg12[%c0_70, %c0_71, %c0_72] : memref<4x16x1xf32, #tpu.memory_space<vmem>>, vector<1x16x1xf32>
      %114 = vector.shape_cast %113 : vector<1x16x1xf32> to vector<16x1xf32>
      %115 = vector.shape_cast %112 : vector<16x1xf32> to vector<1x16x1xf32>
      tpu.vector_store %arg12[%c0_70, %c0_71, %c0_72], %115 {strides = array<i32>} : memref<4x16x1xf32, #tpu.memory_space<vmem>>, vector<1x16x1xf32>,
      %116 = vector.extract_strided_slice %79 {offsets = [0, 0], sizes = [8, 32], strides = [1, 1]} : vector<8x128xf32> to vector<8x32xf32>
      %cst_73 = arith.constant dense<0.000000e+00> : vector<16x32xf32>
      %117 = tpu.matmul %106, %116, %cst_73 {dimension_numbers = #tpu.dot_dimension_numbers<[1], [0], [0], [1], [0, 0, 1, 1], [], []>} : vector<16x8xf32>, vector<8x32xf32>, vector<16x32xf32> -> vector<16x32xf32>
      %c0_74 = arith.constant 0 : index
      %c0_75 = arith.constant 0 : index
      %118 = vector.load %arg13[%c0_74, %c0_75] : memref<16x128xf32, #tpu.memory_space<vmem>>, vector<16x32xf32>
      %119 = vector.broadcast %103 : vector<16x1xf32> to vector<16x32xf32>
      %120 = arith.mulf %119, %118 : vector<16x32xf32>
      %121 = arith.addf %120, %117 : vector<16x32xf32>
      %c0_76 = arith.constant 0 : index
      %c0_77 = arith.constant 0 : index
      %122 = vector.load %arg13[%c0_76, %c0_77] : memref<16x128xf32, #tpu.memory_space<vmem>>, vector<16x32xf32>
      tpu.vector_store %arg13[%c0_76, %c0_77], %121 {strides = array<i32>} : memref<16x128xf32, #tpu.memory_space<vmem>>, vector<16x32xf32>,
      %c0_78 = arith.constant 0 : index
      %c0_79 = arith.constant 0 : index
      %c0_80 = arith.constant 0 : index
      %123 = vector.load %arg11[%c0_78, %c0_79, %c0_80] : memref<4x16x1xf32, #tpu.memory_space<vmem>>, vector<1x16x1xf32>
      %124 = vector.shape_cast %123 : vector<1x16x1xf32> to vector<16x1xf32>
      %125 = vector.shape_cast %101 : vector<16x1xf32> to vector<1x16x1xf32>
      tpu.vector_store %arg11[%c0_78, %c0_79, %c0_80], %125 {strides = array<i32>} : memref<4x16x1xf32, #tpu.memory_space<vmem>>, vector<1x16x1xf32>,
      %126 = vector.extract_strided_slice %77 {offsets = [0, 32], sizes = [8, 32], strides = [1, 1]} : vector<8x128xf32> to vector<8x32xf32>
      %cst_81 = arith.constant dense<0.000000e+00> : vector<16x8xf32>
      %127 = tpu.matmul %19, %126, %cst_81 {dimension_numbers = #tpu.dot_dimension_numbers<[1], [1], [0], [0], [0, 0, 1, 0], [], []>} : vector<16x32xf32>, vector<8x32xf32>, vector<16x8xf32> -> vector<16x8xf32>
      %128 = arith.addf %127, %93 : vector<16x8xf32>
      %c1_82 = arith.constant 1 : index
      %c0_83 = arith.constant 0 : index
      %c0_84 = arith.constant 0 : index
      %129 = vector.load %arg11[%c1_82, %c0_83, %c0_84] : memref<4x16x1xf32, #tpu.memory_space<vmem>>, vector<1x16x1xf32>
      %130 = vector.shape_cast %129 : vector<1x16x1xf32> to vector<16x1xf32>
      %cst_85 = arith.constant dense<0xFF800000> : vector<16xf32>
      %131 = vector.multi_reduction <maximumf>, %128, %cst_85 [1] : vector<16x8xf32> to vector<16xf32>
      %132 = vector.shape_cast %131 : vector<16xf32> to vector<16x1xf32>
      %133 = arith.maximumf %130, %132 : vector<16x1xf32>
      %134 = arith.subf %130, %133 : vector<16x1xf32>
      %135 = math.exp %134 : vector<16x1xf32>
      %136 = vector.broadcast %133 : vector<16x1xf32> to vector<16x8xf32>
      %137 = arith.subf %128, %136 : vector<16x8xf32>
      %138 = math.exp %137 : vector<16x8xf32>
      %c1_86 = arith.constant 1 : index
      %c0_87 = arith.constant 0 : index
      %c0_88 = arith.constant 0 : index
      %139 = vector.load %arg12[%c1_86, %c0_87, %c0_88] : memref<4x16x1xf32, #tpu.memory_space<vmem>>, vector<1x16x1xf32>
      %140 = vector.shape_cast %139 : vector<1x16x1xf32> to vector<16x1xf32>
      %141 = arith.mulf %135, %140 : vector<16x1xf32>
      %cst_89 = arith.constant dense<0.000000e+00> : vector<16xf32>
      %142 = vector.multi_reduction <add>, %138, %cst_89 [1] : vector<16x8xf32> to vector<16xf32>
      %143 = vector.shape_cast %142 : vector<16xf32> to vector<16x1xf32>
      %144 = arith.addf %141, %143 : vector<16x1xf32>
      %c1_90 = arith.constant 1 : index
      %c0_91 = arith.constant 0 : index
      %c0_92 = arith.constant 0 : index
      %145 = vector.load %arg12[%c1_90, %c0_91, %c0_92] : memref<4x16x1xf32, #tpu.memory_space<vmem>>, vector<1x16x1xf32>
      %146 = vector.shape_cast %145 : vector<1x16x1xf32> to vector<16x1xf32>
      %147 = vector.shape_cast %144 : vector<16x1xf32> to vector<1x16x1xf32>
      tpu.vector_store %arg12[%c1_90, %c0_91, %c0_92], %147 {strides = array<i32>} : memref<4x16x1xf32, #tpu.memory_space<vmem>>, vector<1x16x1xf32>,
      %148 = vector.extract_strided_slice %79 {offsets = [0, 32], sizes = [8, 32], strides = [1, 1]} : vector<8x128xf32> to vector<8x32xf32>
      %cst_93 = arith.constant dense<0.000000e+00> : vector<16x32xf32>
      %149 = tpu.matmul %138, %148, %cst_93 {dimension_numbers = #tpu.dot_dimension_numbers<[1], [0], [0], [1], [0, 0, 1, 1], [], []>} : vector<16x8xf32>, vector<8x32xf32>, vector<16x32xf32> -> vector<16x32xf32>
      %c0_94 = arith.constant 0 : index
      %c32_95 = arith.constant 32 : index
      %150 = vector.load %arg13[%c0_94, %c32_95] : memref<16x128xf32, #tpu.memory_space<vmem>>, vector<16x32xf32>
      %151 = vector.broadcast %135 : vector<16x1xf32> to vector<16x32xf32>
      %152 = arith.mulf %151, %150 : vector<16x32xf32>
      %153 = arith.addf %152, %149 : vector<16x32xf32>
      %c0_96 = arith.constant 0 : index
      %c32_97 = arith.constant 32 : index
      %154 = vector.load %arg13[%c0_96, %c32_97] : memref<16x128xf32, #tpu.memory_space<vmem>>, vector<16x32xf32>
      tpu.vector_store %arg13[%c0_96, %c32_97], %153 {strides = array<i32>} : memref<16x128xf32, #tpu.memory_space<vmem>>, vector<16x32xf32>,
      %c1_98 = arith.constant 1 : index
      %c0_99 = arith.constant 0 : index
      %c0_100 = arith.constant 0 : index
      %155 = vector.load %arg11[%c1_98, %c0_99, %c0_100] : memref<4x16x1xf32, #tpu.memory_space<vmem>>, vector<1x16x1xf32>
      %156 = vector.shape_cast %155 : vector<1x16x1xf32> to vector<16x1xf32>
      %157 = vector.shape_cast %133 : vector<16x1xf32> to vector<1x16x1xf32>
      tpu.vector_store %arg11[%c1_98, %c0_99, %c0_100], %157 {strides = array<i32>} : memref<4x16x1xf32, #tpu.memory_space<vmem>>, vector<1x16x1xf32>,
      %158 = vector.extract_strided_slice %77 {offsets = [0, 64], sizes = [8, 32], strides = [1, 1]} : vector<8x128xf32> to vector<8x32xf32>
      %cst_101 = arith.constant dense<0.000000e+00> : vector<16x8xf32>
      %159 = tpu.matmul %20, %158, %cst_101 {dimension_numbers = #tpu.dot_dimension_numbers<[1], [1], [0], [0], [0, 0, 1, 0], [], []>} : vector<16x32xf32>, vector<8x32xf32>, vector<16x8xf32> -> vector<16x8xf32>
      %160 = arith.addf %159, %93 : vector<16x8xf32>
      %c2_102 = arith.constant 2 : index
      %c0_103 = arith.constant 0 : index
      %c0_104 = arith.constant 0 : index
      %161 = vector.load %arg11[%c2_102, %c0_103, %c0_104] : memref<4x16x1xf32, #tpu.memory_space<vmem>>, vector<1x16x1xf32>
      %162 = vector.shape_cast %161 : vector<1x16x1xf32> to vector<16x1xf32>
      %cst_105 = arith.constant dense<0xFF800000> : vector<16xf32>
      %163 = vector.multi_reduction <maximumf>, %160, %cst_105 [1] : vector<16x8xf32> to vector<16xf32>
      %164 = vector.shape_cast %163 : vector<16xf32> to vector<16x1xf32>
      %165 = arith.maximumf %162, %164 : vector<16x1xf32>
      %166 = arith.subf %162, %165 : vector<16x1xf32>
      %167 = math.exp %166 : vector<16x1xf32>
      %168 = vector.broadcast %165 : vector<16x1xf32> to vector<16x8xf32>
      %169 = arith.subf %160, %168 : vector<16x8xf32>
      %170 = math.exp %169 : vector<16x8xf32>
      %c2_106 = arith.constant 2 : index
      %c0_107 = arith.constant 0 : index
      %c0_108 = arith.constant 0 : index
      %171 = vector.load %arg12[%c2_106, %c0_107, %c0_108] : memref<4x16x1xf32, #tpu.memory_space<vmem>>, vector<1x16x1xf32>
      %172 = vector.shape_cast %171 : vector<1x16x1xf32> to vector<16x1xf32>
      %173 = arith.mulf %167, %172 : vector<16x1xf32>
      %cst_109 = arith.constant dense<0.000000e+00> : vector<16xf32>
      %174 = vector.multi_reduction <add>, %170, %cst_109 [1] : vector<16x8xf32> to vector<16xf32>
      %175 = vector.shape_cast %174 : vector<16xf32> to vector<16x1xf32>
      %176 = arith.addf %173, %175 : vector<16x1xf32>
      %c2_110 = arith.constant 2 : index
      %c0_111 = arith.constant 0 : index
      %c0_112 = arith.constant 0 : index
      %177 = vector.load %arg12[%c2_110, %c0_111, %c0_112] : memref<4x16x1xf32, #tpu.memory_space<vmem>>, vector<1x16x1xf32>
      %178 = vector.shape_cast %177 : vector<1x16x1xf32> to vector<16x1xf32>
      %179 = vector.shape_cast %176 : vector<16x1xf32> to vector<1x16x1xf32>
      tpu.vector_store %arg12[%c2_110, %c0_111, %c0_112], %179 {strides = array<i32>} : memref<4x16x1xf32, #tpu.memory_space<vmem>>, vector<1x16x1xf32>,
      %180 = vector.extract_strided_slice %79 {offsets = [0, 64], sizes = [8, 32], strides = [1, 1]} : vector<8x128xf32> to vector<8x32xf32>
      %cst_113 = arith.constant dense<0.000000e+00> : vector<16x32xf32>
      %181 = tpu.matmul %170, %180, %cst_113 {dimension_numbers = #tpu.dot_dimension_numbers<[1], [0], [0], [1], [0, 0, 1, 1], [], []>} : vector<16x8xf32>, vector<8x32xf32>, vector<16x32xf32> -> vector<16x32xf32>
      %c0_114 = arith.constant 0 : index
      %c64_115 = arith.constant 64 : index
      %182 = vector.load %arg13[%c0_114, %c64_115] : memref<16x128xf32, #tpu.memory_space<vmem>>, vector<16x32xf32>
      %183 = vector.broadcast %167 : vector<16x1xf32> to vector<16x32xf32>
      %184 = arith.mulf %183, %182 : vector<16x32xf32>
      %185 = arith.addf %184, %181 : vector<16x32xf32>
      %c0_116 = arith.constant 0 : index
      %c64_117 = arith.constant 64 : index
      %186 = vector.load %arg13[%c0_116, %c64_117] : memref<16x128xf32, #tpu.memory_space<vmem>>, vector<16x32xf32>
      tpu.vector_store %arg13[%c0_116, %c64_117], %185 {strides = array<i32>} : memref<16x128xf32, #tpu.memory_space<vmem>>, vector<16x32xf32>,
      %c2_118 = arith.constant 2 : index
      %c0_119 = arith.constant 0 : index
      %c0_120 = arith.constant 0 : index
      %187 = vector.load %arg11[%c2_118, %c0_119, %c0_120] : memref<4x16x1xf32, #tpu.memory_space<vmem>>, vector<1x16x1xf32>
      %188 = vector.shape_cast %187 : vector<1x16x1xf32> to vector<16x1xf32>
      %189 = vector.shape_cast %165 : vector<16x1xf32> to vector<1x16x1xf32>
      tpu.vector_store %arg11[%c2_118, %c0_119, %c0_120], %189 {strides = array<i32>} : memref<4x16x1xf32, #tpu.memory_space<vmem>>, vector<1x16x1xf32>,
      %190 = vector.extract_strided_slice %77 {offsets = [0, 96], sizes = [8, 32], strides = [1, 1]} : vector<8x128xf32> to vector<8x32xf32>
      %cst_121 = arith.constant dense<0.000000e+00> : vector<16x8xf32>
      %191 = tpu.matmul %21, %190, %cst_121 {dimension_numbers = #tpu.dot_dimension_numbers<[1], [1], [0], [0], [0, 0, 1, 0], [], []>} : vector<16x32xf32>, vector<8x32xf32>, vector<16x8xf32> -> vector<16x8xf32>
      %192 = arith.addf %191, %93 : vector<16x8xf32>
      %c3_122 = arith.constant 3 : index
      %c0_123 = arith.constant 0 : index
      %c0_124 = arith.constant 0 : index
      %193 = vector.load %arg11[%c3_122, %c0_123, %c0_124] : memref<4x16x1xf32, #tpu.memory_space<vmem>>, vector<1x16x1xf32>
      %194 = vector.shape_cast %193 : vector<1x16x1xf32> to vector<16x1xf32>
      %cst_125 = arith.constant dense<0xFF800000> : vector<16xf32>
      %195 = vector.multi_reduction <maximumf>, %192, %cst_125 [1] : vector<16x8xf32> to vector<16xf32>
      %196 = vector.shape_cast %195 : vector<16xf32> to vector<16x1xf32>
      %197 = arith.maximumf %194, %196 : vector<16x1xf32>
      %198 = arith.subf %194, %197 : vector<16x1xf32>
      %199 = math.exp %198 : vector<16x1xf32>
      %200 = vector.broadcast %197 : vector<16x1xf32> to vector<16x8xf32>
      %201 = arith.subf %192, %200 : vector<16x8xf32>
      %202 = math.exp %201 : vector<16x8xf32>
      %c3_126 = arith.constant 3 : index
      %c0_127 = arith.constant 0 : index
      %c0_128 = arith.constant 0 : index
      %203 = vector.load %arg12[%c3_126, %c0_127, %c0_128] : memref<4x16x1xf32, #tpu.memory_space<vmem>>, vector<1x16x1xf32>
      %204 = vector.shape_cast %203 : vector<1x16x1xf32> to vector<16x1xf32>
      %205 = arith.mulf %199, %204 : vector<16x1xf32>
      %cst_129 = arith.constant dense<0.000000e+00> : vector<16xf32>
      %206 = vector.multi_reduction <add>, %202, %cst_129 [1] : vector<16x8xf32> to vector<16xf32>
      %207 = vector.shape_cast %206 : vector<16xf32> to vector<16x1xf32>
      %208 = arith.addf %205, %207 : vector<16x1xf32>
      %c3_130 = arith.constant 3 : index
      %c0_131 = arith.constant 0 : index
      %c0_132 = arith.constant 0 : index
      %209 = vector.load %arg12[%c3_130, %c0_131, %c0_132] : memref<4x16x1xf32, #tpu.memory_space<vmem>>, vector<1x16x1xf32>
      %210 = vector.shape_cast %209 : vector<1x16x1xf32> to vector<16x1xf32>
      %211 = vector.shape_cast %208 : vector<16x1xf32> to vector<1x16x1xf32>
      tpu.vector_store %arg12[%c3_130, %c0_131, %c0_132], %211 {strides = array<i32>} : memref<4x16x1xf32, #tpu.memory_space<vmem>>, vector<1x16x1xf32>,
      %212 = vector.extract_strided_slice %79 {offsets = [0, 96], sizes = [8, 32], strides = [1, 1]} : vector<8x128xf32> to vector<8x32xf32>
      %cst_133 = arith.constant dense<0.000000e+00> : vector<16x32xf32>
      %213 = tpu.matmul %202, %212, %cst_133 {dimension_numbers = #tpu.dot_dimension_numbers<[1], [0], [0], [1], [0, 0, 1, 1], [], []>} : vector<16x8xf32>, vector<8x32xf32>, vector<16x32xf32> -> vector<16x32xf32>
      %c0_134 = arith.constant 0 : index
      %c96_135 = arith.constant 96 : index
      %214 = vector.load %arg13[%c0_134, %c96_135] : memref<16x128xf32, #tpu.memory_space<vmem>>, vector<16x32xf32>
      %215 = vector.broadcast %199 : vector<16x1xf32> to vector<16x32xf32>
      %216 = arith.mulf %215, %214 : vector<16x32xf32>
      %217 = arith.addf %216, %213 : vector<16x32xf32>
      %c0_136 = arith.constant 0 : index
      %c96_137 = arith.constant 96 : index
      %218 = vector.load %arg13[%c0_136, %c96_137] : memref<16x128xf32, #tpu.memory_space<vmem>>, vector<16x32xf32>
      tpu.vector_store %arg13[%c0_136, %c96_137], %217 {strides = array<i32>} : memref<16x128xf32, #tpu.memory_space<vmem>>, vector<16x32xf32>,
      %c3_138 = arith.constant 3 : index
      %c0_139 = arith.constant 0 : index
      %c0_140 = arith.constant 0 : index
      %219 = vector.load %arg11[%c3_138, %c0_139, %c0_140] : memref<4x16x1xf32, #tpu.memory_space<vmem>>, vector<1x16x1xf32>
      %220 = vector.shape_cast %219 : vector<1x16x1xf32> to vector<16x1xf32>
      %221 = vector.shape_cast %197 : vector<16x1xf32> to vector<1x16x1xf32>
      tpu.vector_store %arg11[%c3_138, %c0_139, %c0_140], %221 {strides = array<i32>} : memref<4x16x1xf32, #tpu.memory_space<vmem>>, vector<1x16x1xf32>,
    }
    %c2_i32_23 = arith.constant 2 : i32
    %c0_24 = arith.constant 0 : index
    %c0_25 = arith.constant 0 : index
    %35 = vector.load %arg13[%c0_24, %c0_25] : memref<16x128xf32, #tpu.memory_space<vmem>>, vector<16x32xf32>
    %c0_26 = arith.constant 0 : index
    %c0_27 = arith.constant 0 : index
    %c0_28 = arith.constant 0 : index
    %36 = vector.load %arg12[%c0_26, %c0_27, %c0_28] : memref<4x16x1xf32, #tpu.memory_space<vmem>>, vector<1x16x1xf32>
    %37 = vector.shape_cast %36 : vector<1x16x1xf32> to vector<16x1xf32>
    %38 = tpu.reciprocal %37 {approx = true} : vector<16x1xf32> -> vector<16x1xf32>
    %39 = vector.broadcast %38 : vector<16x1xf32> to vector<16x32xf32>
    %40 = arith.mulf %35, %39 : vector<16x32xf32>
    %c0_29 = arith.constant 0 : index
    %c0_30 = arith.constant 0 : index
    %41 = vector.load %arg13[%c0_29, %c0_30] : memref<16x128xf32, #tpu.memory_space<vmem>>, vector<16x32xf32>
    tpu.vector_store %arg13[%c0_29, %c0_30], %40 {strides = array<i32>} : memref<16x128xf32, #tpu.memory_space<vmem>>, vector<16x32xf32>,
    %c0_31 = arith.constant 0 : index
    %c32 = arith.constant 32 : index
    %42 = vector.load %arg13[%c0_31, %c32] : memref<16x128xf32, #tpu.memory_space<vmem>>, vector<16x32xf32>
    %c1 = arith.constant 1 : index
    %c0_32 = arith.constant 0 : index
    %c0_33 = arith.constant 0 : index
    %43 = vector.load %arg12[%c1, %c0_32, %c0_33] : memref<4x16x1xf32, #tpu.memory_space<vmem>>, vector<1x16x1xf32>
    %44 = vector.shape_cast %43 : vector<1x16x1xf32> to vector<16x1xf32>
    %45 = tpu.reciprocal %44 {approx = true} : vector<16x1xf32> -> vector<16x1xf32>
    %46 = vector.broadcast %45 : vector<16x1xf32> to vector<16x32xf32>
    %47 = arith.mulf %42, %46 : vector<16x32xf32>
    %c0_34 = arith.constant 0 : index
    %c32_35 = arith.constant 32 : index
    %48 = vector.load %arg13[%c0_34, %c32_35] : memref<16x128xf32, #tpu.memory_space<vmem>>, vector<16x32xf32>
    tpu.vector_store %arg13[%c0_34, %c32_35], %47 {strides = array<i32>} : memref<16x128xf32, #tpu.memory_space<vmem>>, vector<16x32xf32>,
    %c0_36 = arith.constant 0 : index
    %c64 = arith.constant 64 : index
    %49 = vector.load %arg13[%c0_36, %c64] : memref<16x128xf32, #tpu.memory_space<vmem>>, vector<16x32xf32>
    %c2 = arith.constant 2 : index
    %c0_37 = arith.constant 0 : index
    %c0_38 = arith.constant 0 : index
    %50 = vector.load %arg12[%c2, %c0_37, %c0_38] : memref<4x16x1xf32, #tpu.memory_space<vmem>>, vector<1x16x1xf32>
    %51 = vector.shape_cast %50 : vector<1x16x1xf32> to vector<16x1xf32>
    %52 = tpu.reciprocal %51 {approx = true} : vector<16x1xf32> -> vector<16x1xf32>
    %53 = vector.broadcast %52 : vector<16x1xf32> to vector<16x32xf32>
    %54 = arith.mulf %49, %53 : vector<16x32xf32>
    %c0_39 = arith.constant 0 : index
    %c64_40 = arith.constant 64 : index
    %55 = vector.load %arg13[%c0_39, %c64_40] : memref<16x128xf32, #tpu.memory_space<vmem>>, vector<16x32xf32>
    tpu.vector_store %arg13[%c0_39, %c64_40], %54 {strides = array<i32>} : memref<16x128xf32, #tpu.memory_space<vmem>>, vector<16x32xf32>,
    %c0_41 = arith.constant 0 : index
    %c96 = arith.constant 96 : index
    %56 = vector.load %arg13[%c0_41, %c96] : memref<16x128xf32, #tpu.memory_space<vmem>>, vector<16x32xf32>
    %c3 = arith.constant 3 : index
    %c0_42 = arith.constant 0 : index
    %c0_43 = arith.constant 0 : index
    %57 = vector.load %arg12[%c3, %c0_42, %c0_43] : memref<4x16x1xf32, #tpu.memory_space<vmem>>, vector<1x16x1xf32>
    %58 = vector.shape_cast %57 : vector<1x16x1xf32> to vector<16x1xf32>
    %59 = tpu.reciprocal %58 {approx = true} : vector<16x1xf32> -> vector<16x1xf32>
    %60 = vector.broadcast %59 : vector<16x1xf32> to vector<16x32xf32>
    %61 = arith.mulf %56, %60 : vector<16x32xf32>
    %c0_44 = arith.constant 0 : index
    %c96_45 = arith.constant 96 : index
    %62 = vector.load %arg13[%c0_44, %c96_45] : memref<16x128xf32, #tpu.memory_space<vmem>>, vector<16x32xf32>
    tpu.vector_store %arg13[%c0_44, %c96_45], %61 {strides = array<i32>} : memref<16x128xf32, #tpu.memory_space<vmem>>, vector<16x32xf32>,
    %c0_46 = arith.constant 0 : index
    %c0_47 = arith.constant 0 : index
    %63 = vector.load %arg13[%c0_46, %c0_47] : memref<16x128xf32, #tpu.memory_space<vmem>>, vector<16x128xf32>
    %c0_48 = arith.constant 0 : index
    %c0_49 = arith.constant 0 : index
    %64 = vector.load %arg6[%c0_48, %c0_49] : memref<128x128xf32, #tpu.memory_space<vmem>>, vector<128x128xf32>
    %cst_50 = arith.constant dense<0.000000e+00> : vector<16x128xf32>
    %65 = tpu.matmul %63, %64, %cst_50 {dimension_numbers = #tpu.dot_dimension_numbers<[1], [0], [0], [1], [0, 0, 1, 1], [], []>} : vector<16x128xf32>, vector<128x128xf32>, vector<16x128xf32> -> vector<16x128xf32>
    %c0_51 = arith.constant 0 : index
    %c0_52 = arith.constant 0 : index
    %66 = vector.load %arg7[%c0_51, %c0_52] : memref<1x128xf32, #tpu.memory_space<vmem>>, vector<1x128xf32>
    %67 = vector.broadcast %66 : vector<1x128xf32> to vector<16x128xf32>
    %68 = arith.addf %65, %67 : vector<16x128xf32>
    %c0_53 = arith.constant 0 : index
    %c0_54 = arith.constant 0 : index
    %c0_55 = arith.constant 0 : index
    %69 = vector.load %arg8[%c0_53, %c0_54, %c0_55] : memref<1x16x128xf32, #tpu.memory_space<vmem>>, vector<1x16x128xf32>
    %70 = vector.shape_cast %69 : vector<1x16x128xf32> to vector<16x128xf32>
    %71 = vector.shape_cast %68 : vector<16x128xf32> to vector<1x16x128xf32>
    tpu.vector_store %arg8[%c0_53, %c0_54, %c0_55], %71 {strides = array<i32>} : memref<1x16x128xf32, #tpu.memory_space<vmem>>, vector<1x16x128xf32>,
    return
  }
  func.func @transform_0(%arg0: i32, %arg1: memref<2xi32, #tpu.memory_space<smem>>, %arg2: memref<2xi32, #tpu.memory_space<smem>>) -> (i32, i32, i32) {
    %c0_i32 = arith.constant 0 : i32
    %c0_i32_0 = arith.constant 0 : i32
    %c0_i32_1 = arith.constant 0 : i32
    return %arg0, %c0_i32, %c0_i32_0 : i32, i32, i32
  }
  func.func @transform_1(%arg0: i32, %arg1: memref<2xi32, #tpu.memory_space<smem>>, %arg2: memref<2xi32, #tpu.memory_space<smem>>) -> (i32, i32) {
    %c0_i32 = arith.constant 0 : i32
    %c0_i32_0 = arith.constant 0 : i32
    %c0_i32_1 = arith.constant 0 : i32
    return %c0_i32, %c0_i32_0 : i32, i32
  }
  func.func @transform_2(%arg0: i32, %arg1: memref<2xi32, #tpu.memory_space<smem>>, %arg2: memref<2xi32, #tpu.memory_space<smem>>) -> (i32, i32) {
    %c0_i32 = arith.constant 0 : i32
    %c0_i32_0 = arith.constant 0 : i32
    %c0_i32_1 = arith.constant 0 : i32
    return %c0_i32, %c0_i32_0 : i32, i32
  }
  func.func @transform_3(%arg0: i32, %arg1: memref<2xi32, #tpu.memory_space<smem>>, %arg2: memref<2xi32, #tpu.memory_space<smem>>) -> (i32, i32) {
    %c0_i32 = arith.constant 0 : i32
    %c0_i32_0 = arith.constant 0 : i32
    %c0_i32_1 = arith.constant 0 : i32
    return %c0_i32, %c0_i32_0 : i32, i32
  }
  func.func @transform_4(%arg0: i32, %arg1: memref<2xi32, #tpu.memory_space<smem>>, %arg2: memref<2xi32, #tpu.memory_space<smem>>) -> (i32, i32) {
    %c0_i32 = arith.constant 0 : i32
    %c0_i32_0 = arith.constant 0 : i32
    %c0_i32_1 = arith.constant 0 : i32
    return %c0_i32, %c0_i32_0 : i32, i32
  }
  func.func @transform_5(%arg0: i32, %arg1: memref<2xi32, #tpu.memory_space<smem>>, %arg2: memref<2xi32, #tpu.memory_space<smem>>) -> (i32, i32, i32) {
    %c0_i32 = arith.constant 0 : i32
    %c0_i32_0 = arith.constant 0 : i32
    %c0_i32_1 = arith.constant 0 : i32
    return %arg0, %c0_i32, %c0_i32_0 : i32, i32, i32
  }
}

</mosaic_0001>

<llo_original>
// kernel: tpu_custom_call.1
$region0: #{tpu_custom_call.1}
  #allocation0 [shape = 'u32[]', space=smem, size = 0x4, offset = 0x4, fixed_abs, tag = 'smem constant byte address 0x4 - core index']
  #allocation1 [shape = 'u32[144,128]{1,0:T(1,128)}', space=vmem, size = 0x12000, scoped, tag = 'internal scratch']
  #allocation2 [shape = 'f32[16,128]{1,0:T(8,128)}', space=vmem, size = 0x2000, scoped, tag = 'scratch operand']
  #allocation3 [shape = 'f32[16,128]{1,0:T(8,128)}', space=vmem, size = 0x2000, scoped, tag = 'scratch operand']
  #allocation4 [shape = 'f32[4,16,1]{2,1,0:T(8,128)}', space=vmem, size = 0x8000, scoped, tag = 'scratch operand']
  #allocation5 [shape = 'f32[4,16,1]{2,1,0:T(8,128)}', space=vmem, size = 0x8000, scoped, tag = 'scratch operand']
  #allocation6 [shape = 'f32[16,128]{1,0:T(8,128)}', space=vmem, size = 0x2000, scoped, tag = 'scratch operand']
  #allocation7 [shape = 's32[1]{0}', space=sflag, size = 0x4, scoped, tag = 'scoped memory for tpu_custom_call.1']
  #allocation8 [shape = 'u8[512]{0}', space=smem, size = 0x200, scoped, tag = 'prefetched SMEM operand 0']
  #allocation9 [shape = 'u8[512]{0}', space=smem, size = 0x200, scoped, tag = 'prefetched SMEM operand 1']
  %s0 = inlined_call_operand.hbm [shape: s32[2], index: 0, kind: input, shape index: {}]
  %s1 = inlined_call_operand.vmem [shape: s32[2], index: 1, kind: input, shape index: {}]
  %s2 = inlined_call_operand.hbm [shape: f32[2,16,128], index: 2, kind: input, shape index: {}]
  %s3 = inlined_call_operand.hbm [shape: f32[128,384], index: 3, kind: input, shape index: {}]
  %s4 = inlined_call_operand.vmem [shape: f32[1,384], index: 4, kind: input, shape index: {}]
  %s5 = inlined_call_operand.hbm [shape: f32[128,128], index: 5, kind: input, shape index: {}]
  %s6 = inlined_call_operand.vmem [shape: f32[1,128], index: 6, kind: input, shape index: {}]
  %s7 = inlined_call_operand.hbm [shape: f32[2,16,128], index: 7, kind: output, shape index: {}]
  %s8 = sld [smem:[#allocation0]]
  $region72: #{tpu_custom_call.1} parent=0
    _
  %s10 = ssub.s32 1, %s8
  %s11 = scalar_select 0, %s10, %s8
  %13 = dma.hbm_to_smem %s0, 16, [#allocation8], [#allocation7]
  %s14 = sshll.u32 %s1, 4
  %s15 = int_to_ptr.vmem [resolvable:$true] %s14
  %17 = dma.vmem_to_smem %s15, 16, [#allocation9], [#allocation7]
  %18 = dma.done [#allocation7], 32
  %19 = sfence
  $region1: #{tpu_custom_call.1} parent=0
    #allocation10 [shape = 'u8[16384]{0}', space=vmem, size = 0x4000, scoped, tag = 'input window, operand 2']
    #allocation11 [shape = 's32[2]{0}', space=sflag, size = 0x8, scoped, tag = 'scoped memory for tpu_custom_call.1']
    #allocation12 [shape = 's32[2]{0}', space=sflag, size = 0x8, scoped, tag = 'scoped memory for tpu_custom_call.1']
    #allocation13 [shape = 'u8[196608]{0}', space=vmem, size = 0x30000, scoped, tag = 'input window, operand 3, single buffered']
    #allocation14 [shape = 's32[1]{0}', space=sflag, size = 0x4, scoped, tag = 'scoped memory for tpu_custom_call.1']
    #allocation15 [shape = 'u8[65536]{0}', space=vmem, size = 0x10000, scoped, tag = 'input window, operand 5, single buffered']
    #allocation16 [shape = 'u8[16384]{0}', space=vmem, size = 0x4000, scoped, tag = 'output window, operand 0']
    %20 = vsyncpa [#allocation11], 0
    %s21 = scalar_lea.sflag [#allocation11], 1
    %22 = vsyncpa %s21, 0
    %23 = vsyncpa [#allocation14], 0
    %24 = vsyncpa [#allocation12], 0
    %s25 = scalar_lea.sflag [#allocation12], 1
    %26 = vsyncpa %s25, 0
    loop: start=0, step=1, limit=4
    $region2: #{tpu_custom_call.1} parent=1 // loop_pre_header
      _
    $region3: #{tpu_custom_call.1} parent=1 // loop_header
      %s28 = sphi 0, %s32
      %p29 = scmp.ge.s32.totalorder %s28, 4
      %s38 = sphi 0, %s40
      %s41 = sphi 0, %s38
      %s42 = sphi 0, %s41
      %s58 = sphi 0, %s42
      %s62 = sphi 0, %s62
      %s64 = sphi 0, %s62
      %s65 = sphi 0, %s64
      %s79 = sphi 0, %s65
      %s83 = sphi 0, %s83
      %s85 = sphi 0, %s83
      %s86 = sphi 0, %s85
      %s100 = sphi 0, %s86
      %s104 = sphi 0, %s104
      %s106 = sphi 0, %s104
      %s107 = sphi 0, %s106
      %s121 = sphi 0, %s107
      %s125 = sphi 0, %s125
      %s127 = sphi 0, %s125
      %s128 = sphi 0, %s127
      %s142 = sphi 0, %s128
      %s148 = sphi 0, %s150
      %s151 = sphi 0, %s148
      %s152 = sphi 0, %s151
      %s168 = sphi 0, %s152
    $region4: #{tpu_custom_call.1} parent=1 // loop_header_branch
      %31 = sbr.rel (%p29) target = $region8
    $region5: #{tpu_custom_call.1} parent=1 // loop_body
      %s33 = ssub.s32 %s28, 1
      %s34 = ssub.s32 %s28, 2
      %s35 = sadd.s32 %s28, 1
      %s36 = ssub.s32 %s28, %s35
      %p37 = scmp.eq.s32.totalorder %s36, 0
      %s39 = sadd.s32 %s38, 1
      %s40 = scalar_select %p37, %s38, %s39
      %p43 = pneg %p37
      %p44 = scmp.eq.s32.totalorder %s28, 1
      %p45 = por %p43, %p44
      %p46 = scmp.ne.s32.totalorder %s38, %s41
      %p47 = scmp.eq.s32.totalorder %s28, 0
      %p48 = por %p46, %p47
      %p49 = scmp.ne.s32.totalorder %s38, %s41
      %p50 = scmp.eq.s32.totalorder %s33, 1
      %p51 = por %p49, %p50
      %p52 = scmp.ne.s32.totalorder %s41, %s42
      %p53 = scmp.eq.s32.totalorder %s33, 0
      %p54 = por %p52, %p53
      %p55 = scmp.ne.s32.totalorder %s41, %s42
      %p56 = scmp.eq.s32.totalorder %s34, 1
      %p57 = por %p55, %p56
      %p59 = scmp.ne.s32.totalorder %s42, %s58
      %p60 = scmp.eq.s32.totalorder %s34, 0
      %p61 = por %p59, %p60
      %s63 = sadd.s32 %s62, 1
      %p66 = scmp.eq.s32.totalorder %s28, 1
      %p67 = scmp.ne.s32.totalorder %s62, %s64
      %p68 = scmp.eq.s32.totalorder %s28, 0
      %p69 = por %p67, %p68
      %p70 = scmp.ne.s32.totalorder %s62, %s64
      %p71 = scmp.eq.s32.totalorder %s33, 1
      %p72 = por %p70, %p71
      %p73 = scmp.ne.s32.totalorder %s64, %s65
      %p74 = scmp.eq.s32.totalorder %s33, 0
      %p75 = por %p73, %p74
      %p76 = scmp.ne.s32.totalorder %s64, %s65
      %p77 = scmp.eq.s32.totalorder %s34, 1
      %p78 = por %p76, %p77
      %p80 = scmp.ne.s32.totalorder %s65, %s79
      %p81 = scmp.eq.s32.totalorder %s34, 0
      %p82 = por %p80, %p81
      %s84 = sadd.s32 %s83, 1
      %p87 = scmp.eq.s32.totalorder %s28, 1
      %p88 = scmp.ne.s32.totalorder %s83, %s85
      %p89 = scmp.eq.s32.totalorder %s28, 0
      %p90 = por %p88, %p89
      %p91 = scmp.ne.s32.totalorder %s83, %s85
      %p92 = scmp.eq.s32.totalorder %s33, 1
      %p93 = por %p91, %p92
      %p94 = scmp.ne.s32.totalorder %s85, %s86
      %p95 = scmp.eq.s32.totalorder %s33, 0
      %p96 = por %p94, %p95
      %p97 = scmp.ne.s32.totalorder %s85, %s86
      %p98 = scmp.eq.s32.totalorder %s34, 1
      %p99 = por %p97, %p98
      %p101 = scmp.ne.s32.totalorder %s86, %s100
      %p102 = scmp.eq.s32.totalorder %s34, 0
      %p103 = por %p101, %p102
      %s105 = sadd.s32 %s104, 1
      %p108 = scmp.eq.s32.totalorder %s28, 1
      %p109 = scmp.ne.s32.totalorder %s104, %s106
      %p110 = scmp.eq.s32.totalorder %s28, 0
      %p111 = por %p109, %p110
      %p112 = scmp.ne.s32.totalorder %s104, %s106
      %p113 = scmp.eq.s32.totalorder %s33, 1
      %p114 = por %p112, %p113
      %p115 = scmp.ne.s32.totalorder %s106, %s107
      %p116 = scmp.eq.s32.totalorder %s33, 0
      %p117 = por %p115, %p116
      %p118 = scmp.ne.s32.totalorder %s106, %s107
      %p119 = scmp.eq.s32.totalorder %s34, 1
      %p120 = por %p118, %p119
      %p122 = scmp.ne.s32.totalorder %s107, %s121
      %p123 = scmp.eq.s32.totalorder %s34, 0
      %p124 = por %p122, %p123
      %s126 = sadd.s32 %s125, 1
      %p129 = scmp.eq.s32.totalorder %s28, 1
      %p130 = scmp.ne.s32.totalorder %s125, %s127
      %p131 = scmp.eq.s32.totalorder %s28, 0
      %p132 = por %p130, %p131
      %p133 = scmp.ne.s32.totalorder %s125, %s127
      %p134 = scmp.eq.s32.totalorder %s33, 1
      %p135 = por %p133, %p134
      %p136 = scmp.ne.s32.totalorder %s127, %s128
      %p137 = scmp.eq.s32.totalorder %s33, 0
      %p138 = por %p136, %p137
      %p139 = scmp.ne.s32.totalorder %s127, %s128
      %p140 = scmp.eq.s32.totalorder %s34, 1
      %p141 = por %p139, %p140
      %p143 = scmp.ne.s32.totalorder %s128, %s142
      %p144 = scmp.eq.s32.totalorder %s34, 0
      %p145 = por %p143, %p144
      %s146 = ssub.s32 %s28, %s35
      %p147 = scmp.eq.s32.totalorder %s146, 0
      %s149 = sadd.s32 %s148, 1
      %s150 = scalar_select %p147, %s148, %s149
      %p153 = pneg %p147
      %p154 = scmp.eq.s32.totalorder %s28, 1
      %p155 = por %p153, %p154
      %p156 = scmp.ne.s32.totalorder %s148, %s151
      %p157 = scmp.eq.s32.totalorder %s28, 0
      %p158 = por %p156, %p157
      %p159 = scmp.ne.s32.totalorder %s148, %s151
      %p160 = scmp.eq.s32.totalorder %s33, 1
      %p161 = por %p159, %p160
      %p162 = scmp.ne.s32.totalorder %s151, %s152
      %p163 = scmp.eq.s32.totalorder %s33, 0
      %p164 = por %p162, %p163
      %p165 = scmp.ne.s32.totalorder %s151, %s152
      %p166 = scmp.eq.s32.totalorder %s34, 1
      %p167 = por %p165, %p166
      %p169 = scmp.ne.s32.totalorder %s152, %s168
      %p170 = scmp.eq.s32.totalorder %s34, 0
      %p171 = por %p169, %p170
      %p172 = scmp.le.s32.totalorder 1, %s28
      %p173 = scmp.lt.s32.totalorder %s28, 3
      %p174 = pnand %p172, %p173
      %p175 = pneg %p174
      // Predicated region
      $region9: #{tpu_custom_call.1} parent=5 // pred_check
        _
      $region10: #{tpu_custom_call.1} parent=5 // pred_check_branch
        %177 = sbr.rel (%p174) target = $region12
      $region11: #{tpu_custom_call.1} parent=5 // pred_region
        %s178 = ssub.s32 %s28, 1
        // Predicated region
        $region13: #{tpu_custom_call.1} parent=11 // pred_check
          %p179 = pneg %p75
        $region14: #{tpu_custom_call.1} parent=11 // pred_check_branch
          %181 = sbr.rel (%p179) target = $region16
        $region15: #{tpu_custom_call.1} parent=11 // pred_region
          %s183 = ssub.s32 6144, 6144
          %184 = vsyncadd [#allocation14], %s183
          %s185 = sshll.u32 [#allocation13], 4
          %s186 = int_to_ptr.vmem [resolvable:$true] %s185
          %191 = dma.hbm_to_vmem [thread:$0]  %s3, 6144, %s186, [#allocation14], 384, 384, 24
        $region16: #{tpu_custom_call.1} parent=11 // pred_fallthru
          _
        // Predicated region
        $region17: #{tpu_custom_call.1} parent=11 // pred_check
          %p192 = pneg %p96
        $region18: #{tpu_custom_call.1} parent=11 // pred_check_branch
          %194 = sbr.rel (%p192) target = $region20
        $region19: #{tpu_custom_call.1} parent=11 // pred_region
          _
        $region20: #{tpu_custom_call.1} parent=11 // pred_fallthru
          _
        // Predicated region
        $region21: #{tpu_custom_call.1} parent=11 // pred_check
          %p195 = pneg %p117
        $region22: #{tpu_custom_call.1} parent=11 // pred_check_branch
          %197 = sbr.rel (%p195) target = $region24
        $region23: #{tpu_custom_call.1} parent=11 // pred_region
          %s199 = ssub.s32 2048, 2048
          %200 = vsyncadd [#allocation14], %s199
          %s201 = sshll.u32 [#allocation15], 4
          %s202 = int_to_ptr.vmem [resolvable:$true] %s201
          %207 = dma.hbm_to_vmem [thread:$0]  %s5, 2048, %s202, [#allocation14], 128, 128, 8
        $region24: #{tpu_custom_call.1} parent=11 // pred_fallthru
          _
        // Predicated region
        $region25: #{tpu_custom_call.1} parent=11 // pred_check
          %p208 = pneg %p138
        $region26: #{tpu_custom_call.1} parent=11 // pred_check_branch
          %210 = sbr.rel (%p208) target = $region28
        $region27: #{tpu_custom_call.1} parent=11 // pred_region
          _
        $region28: #{tpu_custom_call.1} parent=11 // pred_fallthru
          _
      $region12: #{tpu_custom_call.1} parent=5 // pred_fallthru
        _
      %p211 = scmp.lt.s32.totalorder %s28, 2
      // Predicated region
      $region29: #{tpu_custom_call.1} parent=5 // pred_check
        %p212 = pneg %p211
      $region30: #{tpu_custom_call.1} parent=5 // pred_check_branch
        %214 = sbr.rel (%p212) target = $region32
      $region31: #{tpu_custom_call.1} parent=5 // pred_region
        // Predicated region
        $region33: #{tpu_custom_call.1} parent=31 // pred_check
          %p215 = pneg %p48
        $region34: #{tpu_custom_call.1} parent=31 // pred_check_branch
          %217 = sbr.rel (%p215) target = $region36
        $region35: #{tpu_custom_call.1} parent=31 // pred_region
          %s218 = sand.u32 %s38, 1
          %s219 = scalar_lea.sflag [#allocation11], %s218
          %s220 = sand.u32 %s38, 1
          %s221 = smul.addr %s220, 16
          %s222 = scalar_lea.vmem [#allocation10], %s221
          %s224 = ssub.s32 256, 256
          %225 = vsyncadd %s219, %s224
          %s226 = smul.addr %s28, 2
          %s227 = smul.addr %s226, 128
          %s228 = scalar_lea.hbm %s2, %s227
          %s229 = sshll.u32 %s222, 4
          %s230 = int_to_ptr.vmem [resolvable:$true] %s229
          %235 = dma.hbm_to_vmem [thread:$0]  %s228, 256, %s230, %s219, 128, 128, 8
        $region36: #{tpu_custom_call.1} parent=31 // pred_fallthru
          _
      $region32: #{tpu_custom_call.1} parent=5 // pred_fallthru
        _
      %p236 = scmp.le.s32.totalorder 1, %s28
      %p237 = scmp.lt.s32.totalorder %s28, 3
      %p238 = pnand %p236, %p237
      %p239 = pneg %p238
      // Predicated region
      $region37: #{tpu_custom_call.1} parent=5 // pred_check
        _
      $region38: #{tpu_custom_call.1} parent=5 // pred_check_branch
        %241 = sbr.rel (%p238) target = $region40
      $region39: #{tpu_custom_call.1} parent=5 // pred_region
        %s242 = ssub.s32 %s28, 1
        %s243 = sand.u32 %s41, 1
        %s244 = scalar_lea.sflag [#allocation11], %s243
        %s245 = sand.u32 %s41, 1
        %s246 = smul.addr %s245, 16
        %s247 = scalar_lea.vmem [#allocation10], %s246
        // Predicated region
        $region41: #{tpu_custom_call.1} parent=39 // pred_check
          %p248 = pneg %p54
        $region42: #{tpu_custom_call.1} parent=39 // pred_check_branch
          %250 = sbr.rel (%p248) target = $region44
        $region43: #{tpu_custom_call.1} parent=39 // pred_region
          %251 = dma.done %s244, 256
        $region44: #{tpu_custom_call.1} parent=39 // pred_fallthru
          _
        // Predicated region
        $region45: #{tpu_custom_call.1} parent=39 // pred_check
          %p252 = pneg %p75
        $region46: #{tpu_custom_call.1} parent=39 // pred_check_branch
          %254 = sbr.rel (%p252) target = $region48
        $region47: #{tpu_custom_call.1} parent=39 // pred_region
          %255 = dma.done [#allocation14], 6144
        $region48: #{tpu_custom_call.1} parent=39 // pred_fallthru
          _
        // Predicated region
        $region49: #{tpu_custom_call.1} parent=39 // pred_check
          %p256 = pneg %p117
        $region50: #{tpu_custom_call.1} parent=39 // pred_check_branch
          %258 = sbr.rel (%p256) target = $region52
        $region51: #{tpu_custom_call.1} parent=39 // pred_region
          %259 = dma.done [#allocation14], 2048
        $region52: #{tpu_custom_call.1} parent=39 // pred_fallthru
          _
        %s260 = sand.u32 %s41, 1
        %s261 = scalar_lea.sflag [#allocation11], %s260
        %s262 = sand.u32 %s41, 1
        %s263 = smul.addr %s262, 16
        %s264 = scalar_lea.vmem [#allocation10], %s263
        %p265 = pneg %p54
        %p266 = pneg %p51
        %p267 = pneg %p75
        %p268 = pneg %p72
        %p269 = pneg %p96
        %p270 = pneg %p93
        %p271 = pneg %p117
        %p272 = pneg %p114
        %p273 = pneg %p138
        %p274 = pneg %p135
        %p275 = pneg %p164
        %p276 = pneg %p161
        %s277 = sand.u32 %s151, 1
        %s278 = scalar_lea.sflag [#allocation12], %s277
        %s279 = sand.u32 %s151, 1
        %s280 = smul.addr %s279, 16
        %s281 = scalar_lea.vmem [#allocation16], %s280
        %s282 = sld [smem:[#allocation8 + %s33]]
        %s283 = sld [smem:[#allocation9 + %s33]]
        %v284 = vld [vmem:[%s247] sm:$0xff]
        %v285 = vld [vmem:[%s247 + $0x8] sm:$0xff]
        %v286 = vld [vmem:[#allocation13] sm:$0xff]
        %v287 = vld [vmem:[#allocation13 + $0x8] sm:$0xff]
        %v288 = vld [vmem:[#allocation13 + $0x10] sm:$0xff]
        %v289 = vld [vmem:[#allocation13 + $0x18] sm:$0xff]
        %v290 = vld [vmem:[#allocation13 + $0x20] sm:$0xff]
        %v291 = vld [vmem:[#allocation13 + $0x28] sm:$0xff]
        %v292 = vld [vmem:[#allocation13 + $0x30] sm:$0xff]
        %v293 = vld [vmem:[#allocation13 + $0x38] sm:$0xff]
        %v294 = vld [vmem:[#allocation13 + $0x40] sm:$0xff]
        %v295 = vld [vmem:[#allocation13 + $0x48] sm:$0xff]
        %v296 = vld [vmem:[#allocation13 + $0x50] sm:$0xff]
        %v297 = vld [vmem:[#allocation13 + $0x58] sm:$0xff]
        %v298 = vld [vmem:[#allocation13 + $0x60] sm:$0xff]
        %v299 = vld [vmem:[#allocation13 + $0x68] sm:$0xff]
        %v300 = vld [vmem:[#allocation13 + $0x70] sm:$0xff]
        %v301 = vld [vmem:[#allocation13 + $0x78] sm:$0xff]
        %v302 = vld [vmem:[#allocation13 + $0x80] sm:$0xff]
        %v303 = vld [vmem:[#allocation13 + $0x88] sm:$0xff]
        %v304 = vld [vmem:[#allocation13 + $0x90] sm:$0xff]
        %v305 = vld [vmem:[#allocation13 + $0x98] sm:$0xff]
        %v306 = vld [vmem:[#allocation13 + $0xa0] sm:$0xff]
        %v307 = vld [vmem:[#allocation13 + $0xa8] sm:$0xff]
        %v308 = vld [vmem:[#allocation13 + $0xb0] sm:$0xff]
        %v309 = vld [vmem:[#allocation13 + $0xb8] sm:$0xff]
        %v310 = vld [vmem:[#allocation13 + $0xc0] sm:$0xff]
        %v311 = vld [vmem:[#allocation13 + $0xc8] sm:$0xff]
        %v312 = vld [vmem:[#allocation13 + $0xd0] sm:$0xff]
        %v313 = vld [vmem:[#allocation13 + $0xd8] sm:$0xff]
        %v314 = vld [vmem:[#allocation13 + $0xe0] sm:$0xff]
        %v315 = vld [vmem:[#allocation13 + $0xe8] sm:$0xff]
        %v316 = vld [vmem:[#allocation13 + $0xf0] sm:$0xff]
        %v317 = vld [vmem:[#allocation13 + $0xf8] sm:$0xff]
        %v318 = vld [vmem:[#allocation13 + $0x100] sm:$0xff]
        %v319 = vld [vmem:[#allocation13 + $0x108] sm:$0xff]
        %v320 = vld [vmem:[#allocation13 + $0x110] sm:$0xff]
        %v321 = vld [vmem:[#allocation13 + $0x118] sm:$0xff]
        %v322 = vld [vmem:[#allocation13 + $0x120] sm:$0xff]
        %v323 = vld [vmem:[#allocation13 + $0x128] sm:$0xff]
        %v324 = vld [vmem:[#allocation13 + $0x130] sm:$0xff]
        %v325 = vld [vmem:[#allocation13 + $0x138] sm:$0xff]
        %v326 = vld [vmem:[#allocation13 + $0x140] sm:$0xff]
        %v327 = vld [vmem:[#allocation13 + $0x148] sm:$0xff]
        %v328 = vld [vmem:[#allocation13 + $0x150] sm:$0xff]
        %v329 = vld [vmem:[#allocation13 + $0x158] sm:$0xff]
        %v330 = vld [vmem:[#allocation13 + $0x160] sm:$0xff]
        %v331 = vld [vmem:[#allocation13 + $0x168] sm:$0xff]
        %v332 = vld [vmem:[#allocation13 + $0x170] sm:$0xff]
        %v333 = vld [vmem:[#allocation13 + $0x178] sm:$0xff]
        %v334 = vld [vmem:[%s4] sm:$0x7]
        %v336 = vlaneseq
        %v337 = vshrl.u32 %v336, 7
        %v338 = vsub.s32 0, %v337
        %v339 = vrot.slane %v334, %v338
        %v340 = vlaneseq
        %v341 = vshrl.u32 %v340, 7
        %v342 = vsub.s32 1, %v341
        %v343 = vrot.slane %v334, %v342
        %v344 = vlaneseq
        %v345 = vshrl.u32 %v344, 7
        %v346 = vsub.s32 2, %v345
        %v347 = vrot.slane %v334, %v346
        %351 = vmatprep.subr.mxu0 %v332
        %352 = vmatpush1.msra.mxu0 %v331
        %353 = vmatprep.subr.mxu0 %v329
        %354 = vmatpush1.msra.mxu0 %v328
        %355 = vmatprep.subr.mxu0 %v326
        %356 = vmatpush1.msra.mxu0 %v325
        %357 = vmatprep.subr.mxu0 %v323
        %358 = vmatpush1.msra.mxu0 %v322
        %359 = vmatprep.subr.mxu0 %v320
        %360 = vmatpush1.msra.mxu0 %v319
        %361 = vmatprep.subr.mxu0 %v317
        %362 = vmatpush1.msra.mxu0 %v316
        %363 = vmatprep.subr.mxu0 %v314
        %364 = vmatpush1.msra.mxu0 %v313
        %365 = vmatprep.subr.mxu0 %v311
        %366 = vmatpush1.msra.mxu0 %v310
        %367 = vmatprep.subr.mxu0 %v308
        %368 = vmatpush1.msra.mxu0 %v307
        %369 = vmatprep.subr.mxu0 %v305
        %370 = vmatpush1.msra.mxu0 %v304
        %371 = vmatprep.subr.mxu0 %v302
        %372 = vmatpush1.msra.mxu0 %v301
        %373 = vmatprep.subr.mxu0 %v299
        %374 = vmatpush1.msra.mxu0 %v298
        %375 = vmatprep.subr.mxu0 %v296
        %376 = vmatpush1.msra.mxu0 %v295
        %377 = vmatprep.subr.mxu0 %v293
        %378 = vmatpush1.msra.mxu0 %v292
        %379 = vmatprep.subr.mxu0 %v290
        %380 = vmatpush1.msra.mxu0 %v289
        %381 = vmatprep.subr.mxu0 %v287
        %382 = vmatpush1.msra.mxu0 %v286
        %383 = vmatprep.subr.mxu0 0.0
        %384 = vmatpush2.msra.mxu0 0.0
        %385 = vmatprep.subr.mxu0 0.0
        %386 = vmatpush2.msra.mxu0 0.0
        %387 = vmatprep.subr.mxu0 0.0
        %388 = vmatpush2.msra.mxu0 0.0
        %389 = vmatprep.subr.mxu0 0.0
        %390 = vmatpush2.msra.mxu0 0.0
        %391 = vmatprep.subr.mxu0 0.0
        %392 = vmatpush2.msra.mxu0 0.0
        %393 = vmatprep.subr.mxu0 0.0
        %394 = vmatpush2.msra.mxu0 0.0
        %395 = vmatprep.subr.mxu0 0.0
        %396 = vmatpush2.msra.mxu0 0.0
        %397 = vmatprep.subr.mxu0 0.0
        %398 = vmatpush2.msra.mxu0 0.0
        %399 = vmatprep.subr.mxu0 0.0
        %400 = vmatpush2.msra.mxu0 0.0
        %401 = vmatprep.subr.mxu0 0.0
        %402 = vmatpush2.msra.mxu0 0.0
        %403 = vmatprep.subr.mxu0 0.0
        %404 = vmatpush2.msra.mxu0 0.0
        %405 = vmatprep.subr.mxu0 0.0
        %406 = vmatpush2.msra.mxu0 0.0
        %407 = vmatprep.subr.mxu0 0.0
        %408 = vmatpush2.msra.mxu0 0.0
        %409 = vmatprep.subr.mxu0 0.0
        %410 = vmatpush2.msra.mxu0 0.0
        %411 = vmatprep.subr.mxu0 0.0
        %412 = vmatpush2.msra.mxu0 0.0
        %413 = vmatprep.subr.mxu0 0.0
        %414 = vmatpush2.msra.mxu0 0.0
        %415 = vmatprep.mubr.f32.mxu0 0.0
        %416 = vmatmul.mubr.f32.gmra.mxu0 %v284
        %v417 = vpop.f32.mrf.mxu0
        %v418 = vadd.f32 %v339, %v417
        %v419 = vpop.f32.mrf.mxu0
        %v420 = vadd.f32 %v343, %v419
        %421 = vmatprep.mubr.f32.mxu0 0.0
        %422 = vmatmul.mubr.f32.gmra.mxu0 %v285
        %v423 = vpop.f32.mrf.mxu0
        %v424 = vadd.f32 %v339, %v423
        %v425 = vpop.f32.mrf.mxu0
        %v426 = vadd.f32 %v343, %v425
        %427 = vdwg.mxu0
        %428 = vmatprep.subr.mxu0 0.0
        %429 = vmatpush1.msra.mxu0 %v333
        %430 = vmatprep.subr.mxu0 0.0
        %431 = vmatpush1.msra.mxu0 %v330
        %432 = vmatprep.subr.mxu0 0.0
        %433 = vmatpush1.msra.mxu0 %v327
        %434 = vmatprep.subr.mxu0 0.0
        %435 = vmatpush1.msra.mxu0 %v324
        %436 = vmatprep.subr.mxu0 0.0
        %437 = vmatpush1.msra.mxu0 %v321
        %438 = vmatprep.subr.mxu0 0.0
        %439 = vmatpush1.msra.mxu0 %v318
        %440 = vmatprep.subr.mxu0 0.0
        %441 = vmatpush1.msra.mxu0 %v315
        %442 = vmatprep.subr.mxu0 0.0
        %443 = vmatpush1.msra.mxu0 %v312
        %444 = vmatprep.subr.mxu0 0.0
        %445 = vmatpush1.msra.mxu0 %v309
        %446 = vmatprep.subr.mxu0 0.0
        %447 = vmatpush1.msra.mxu0 %v306
        %448 = vmatprep.subr.mxu0 0.0
        %449 = vmatpush1.msra.mxu0 %v303
        %450 = vmatprep.subr.mxu0 0.0
        %451 = vmatpush1.msra.mxu0 %v300
        %452 = vmatprep.subr.mxu0 0.0
        %453 = vmatpush1.msra.mxu0 %v297
        %454 = vmatprep.subr.mxu0 0.0
        %455 = vmatpush1.msra.mxu0 %v294
        %456 = vmatprep.subr.mxu0 0.0
        %457 = vmatpush1.msra.mxu0 %v291
        %458 = vmatprep.subr.mxu0 0.0
        %459 = vmatpush1.msra.mxu0 %v288
        %460 = vmatprep.subr.mxu0 0.0
        %461 = vmatpush2.msra.mxu0 0.0
        %462 = vmatprep.subr.mxu0 0.0
        %463 = vmatpush2.msra.mxu0 0.0
        %464 = vmatprep.subr.mxu0 0.0
        %465 = vmatpush2.msra.mxu0 0.0
        %466 = vmatprep.subr.mxu0 0.0
        %467 = vmatpush2.msra.mxu0 0.0
        %468 = vmatprep.subr.mxu0 0.0
        %469 = vmatpush2.msra.mxu0 0.0
        %470 = vmatprep.subr.mxu0 0.0
        %471 = vmatpush2.msra.mxu0 0.0
        %472 = vmatprep.subr.mxu0 0.0
        %473 = vmatpush2.msra.mxu0 0.0
        %474 = vmatprep.subr.mxu0 0.0
        %475 = vmatpush2.msra.mxu0 0.0
        %476 = vmatprep.subr.mxu0 0.0
        %477 = vmatpush2.msra.mxu0 0.0
        %478 = vmatprep.subr.mxu0 0.0
        %479 = vmatpush2.msra.mxu0 0.0
        %480 = vmatprep.subr.mxu0 0.0
        %481 = vmatpush2.msra.mxu0 0.0
        %482 = vmatprep.subr.mxu0 0.0
        %483 = vmatpush2.msra.mxu0 0.0
        %484 = vmatprep.subr.mxu0 0.0
        %485 = vmatpush2.msra.mxu0 0.0
        %486 = vmatprep.subr.mxu0 0.0
        %487 = vmatpush2.msra.mxu0 0.0
        %488 = vmatprep.subr.mxu0 0.0
        %489 = vmatpush2.msra.mxu0 0.0
        %490 = vmatprep.subr.mxu0 0.0
        %491 = vmatpush2.msra.mxu0 0.0
        %492 = vmatprep.mubr.f32.mxu0 0.0
        %493 = vmatmul.mubr.f32.gmra.mxu0 %v284
        %v494 = vpop.f32.mrf.mxu0
        %v495 = vadd.f32 %v347, %v494
        %v496 = vpop.f32.mrf.mxu0
        %497 = vmatprep.mubr.f32.mxu0 0.0
        %498 = vmatmul.mubr.f32.gmra.mxu0 %v285
        %v499 = vpop.f32.mrf.mxu0
        %v500 = vadd.f32 %v347, %v499
        %v501 = vpop.f32.mrf.mxu0
        %502 = vdwg.mxu0
        %v503 = vmul.f32 %v418, 0.17677669
        %v504 = vmul.f32 %v424, 0.17677669
        %505 = vst [vmem:[#allocation2] sm:$0xff] %v420
        %506 = vst [vmem:[#allocation2 + $0x8] sm:$0xff] %v426
        %507 = vst [vmem:[#allocation3] sm:$0xff] %v495
        %508 = vst [vmem:[#allocation3 + $0x8] sm:$0xff] %v500
        %vm509 = vcmask 7168
        %510 = vst.msk [vmem:[#allocation4] sm:$0xff] %vm509, -1e+30
        %511 = vst.msk [vmem:[#allocation4 + $0x8] sm:$0xff] %vm509, -1e+30
        %512 = vst.msk [vmem:[#allocation4 + $0x10] sm:$0xff] %vm509, -1e+30
        %513 = vst.msk [vmem:[#allocation4 + $0x18] sm:$0xff] %vm509, -1e+30
        %514 = vst.msk [vmem:[#allocation4 + $0x20] sm:$0xff] %vm509, -1e+30
        %515 = vst.msk [vmem:[#allocation4 + $0x28] sm:$0xff] %vm509, -1e+30
        %516 = vst.msk [vmem:[#allocation4 + $0x30] sm:$0xff] %vm509, -1e+30
        %517 = vst.msk [vmem:[#allocation4 + $0x38] sm:$0xff] %vm509, -1e+30
        %518 = vst.msk [vmem:[#allocation5] sm:$0xff] %vm509, 0.0
        %519 = vst.msk [vmem:[#allocation5 + $0x8] sm:$0xff] %vm509, 0.0
        %520 = vst.msk [vmem:[#allocation5 + $0x10] sm:$0xff] %vm509, 0.0
        %521 = vst.msk [vmem:[#allocation5 + $0x18] sm:$0xff] %vm509, 0.0
        %522 = vst.msk [vmem:[#allocation5 + $0x20] sm:$0xff] %vm509, 0.0
        %523 = vst.msk [vmem:[#allocation5 + $0x28] sm:$0xff] %vm509, 0.0
        %524 = vst.msk [vmem:[#allocation5 + $0x30] sm:$0xff] %vm509, 0.0
        %525 = vst.msk [vmem:[#allocation5 + $0x38] sm:$0xff] %vm509, 0.0
        %526 = vst [vmem:[#allocation6] sm:$0xff] 0.0
        %527 = vst [vmem:[#allocation6 + $0x8] sm:$0xff] 0.0
        %v528 = vlaneseq
        %v529 = vshrl.u32 %v528, 7
        %v530 = vadd.s32 %v529, 8
        %v531 = vstv %s282
        %vm532 = vcmp.ge.s32.totalorder %v529, %v531
        %vm533 = vcmp.ge.s32.totalorder %v530, %v531
        %v534 = vstv %s283
        %vm535 = vcmp.lt.s32.totalorder %v529, %v534
        %vm536 = vcmp.lt.s32.totalorder %v530, %v534
        %vm537 = vmand %vm532, %vm535
        %vm538 = vmand %vm533, %vm536
        loop: start=0, step=1, limit=2
        $region53: #{tpu_custom_call.1} parent=39 // loop_pre_header
          _
        $region54: #{tpu_custom_call.1} parent=39 // loop_header
          %s540 = sphi 0, %s544
          %p541 = scmp.ge.s32.totalorder %s540, 2
        $region55: #{tpu_custom_call.1} parent=39 // loop_header_branch
          %543 = sbr.rel (%p541) target = $region59
        $region56: #{tpu_custom_call.1} parent=39 // loop_body
          %s545 = smul.u32 %s540, 8
          %s546 = scalar_lea.vmem [#allocation2], %s545
          %v547 = vld [vmem:[%s546] sm:$0xff]
          %s548 = scalar_lea.vmem [#allocation3], %s545
          %v549 = vld [vmem:[%s548] sm:$0xff]
          %v550 = vlaneseq
          %v551 = vand.u32 %v550, 127
          %v552 = vstv %s545
          %v553 = vadd.s32 %v552, %v551
          %vm554 = vcmp.ge.s32.totalorder %v553, %v531
          %vm555 = vcmp.lt.s32.totalorder %v553, %v534
          %vm556 = vmand %vm554, %vm555
          %v557 = vsel %vm537, 1, 0
          %v558 = vsel %vm538, 1, 0
          %vm559 = vcmp.eq.s32.totalorder %v557, 1
          %vm560 = vcmp.eq.s32.totalorder %v558, 1
          %v561 = vsel %vm556, 1, 0
          %vm562 = vcmp.eq.s32.totalorder %v561, 1
          %vm563 = vmand %vm559, %vm562
          %vm564 = vmand %vm560, %vm562
          %v565 = vsel %vm563, 0.0, -1e+10
          %v566 = vsel %vm564, 0.0, -1e+10
          %vm567 = vcmask 261120
          %v569 = vsel %vm567, %v503, 0
          %v572 = vsel %vm567, %v504, 0
          %v575 = vsel %vm567, %v547, 0
          %577 = vmatprep.subr.mxu0 0.0
          %578 = vmatpush1.xpose.msra.mxu0 0.0
          %579 = vmatprep.subr.mxu0 0.0
          %580 = vmatpush1.xpose.msra.mxu0 0.0
          %581 = vmatprep.subr.mxu0 0.0
          %582 = vmatpush1.xpose.msra.mxu0 0.0
          %583 = vmatprep.subr.mxu0 0.0
          %584 = vmatpush1.xpose.msra.mxu0 0.0
          %585 = vmatprep.subr.mxu0 0.0
          %586 = vmatpush1.xpose.msra.mxu0 0.0
          %587 = vmatprep.subr.mxu0 0.0
          %588 = vmatpush1.xpose.msra.mxu0 0.0
          %589 = vmatprep.subr.mxu0 0.0
          %590 = vmatpush1.xpose.msra.mxu0 0.0
          %591 = vmatprep.subr.mxu0 0.0
          %592 = vmatpush1.xpose.msra.mxu0 0.0
          %593 = vmatprep.subr.mxu0 0.0
          %594 = vmatpush1.xpose.msra.mxu0 0.0
          %595 = vmatprep.subr.mxu0 0.0
          %596 = vmatpush1.xpose.msra.mxu0 0.0
          %597 = vmatprep.subr.mxu0 0.0
          %598 = vmatpush1.xpose.msra.mxu0 0.0
          %599 = vmatprep.subr.mxu0 0.0
          %600 = vmatpush1.xpose.msra.mxu0 0.0
          %601 = vmatprep.subr.mxu0 0.0
          %602 = vmatpush1.xpose.msra.mxu0 0.0
          %603 = vmatprep.subr.mxu0 0.0
          %604 = vmatpush1.xpose.msra.mxu0 0.0
          %605 = vmatprep.subr.mxu0 0.0
          %606 = vmatpush1.xpose.msra.mxu0 0.0
          %607 = vmatprep.subr.mxu0 0.0
          %608 = vmatpush1.xpose.msra.mxu0 %v575
          %609 = vmatprep.subr.mxu0 0.0
          %610 = vmatpush2.xpose.msra.mxu0 0.0
          %611 = vmatprep.subr.mxu0 0.0
          %612 = vmatpush2.xpose.msra.mxu0 0.0
          %613 = vmatprep.subr.mxu0 0.0
          %614 = vmatpush2.xpose.msra.mxu0 0.0
          %615 = vmatprep.subr.mxu0 0.0
          %616 = vmatpush2.xpose.msra.mxu0 0.0
          %617 = vmatprep.subr.mxu0 0.0
          %618 = vmatpush2.xpose.msra.mxu0 0.0
          %619 = vmatprep.subr.mxu0 0.0
          %620 = vmatpush2.xpose.msra.mxu0 0.0
          %621 = vmatprep.subr.mxu0 0.0
          %622 = vmatpush2.xpose.msra.mxu0 0.0
          %623 = vmatprep.subr.mxu0 0.0
          %624 = vmatpush2.xpose.msra.mxu0 0.0
          %625 = vmatprep.subr.mxu0 0.0
          %626 = vmatpush2.xpose.msra.mxu0 0.0
          %627 = vmatprep.subr.mxu0 0.0
          %628 = vmatpush2.xpose.msra.mxu0 0.0
          %629 = vmatprep.subr.mxu0 0.0
          %630 = vmatpush2.xpose.msra.mxu0 0.0
          %631 = vmatprep.subr.mxu0 0.0
          %632 = vmatpush2.xpose.msra.mxu0 0.0
          %633 = vmatprep.subr.mxu0 0.0
          %634 = vmatpush2.xpose.msra.mxu0 0.0
          %635 = vmatprep.subr.mxu0 0.0
          %636 = vmatpush2.xpose.msra.mxu0 0.0
          %637 = vmatprep.subr.mxu0 0.0
          %638 = vmatpush2.xpose.msra.mxu0 0.0
          %639 = vmatprep.subr.mxu0 0.0
          %640 = vmatpush2.xpose.msra.mxu0 0.0
          %641 = vmatprep.mubr.f32.mxu0 0.0
          %642 = vmatmul.mubr.f32.gmra.mxu0 %v569
          %v643 = vpop.f32.mrf.mxu0
          %v644 = vadd.f32 %v565, %v643
          %v645 = vpop.f32.mrf.mxu0
          %646 = vmatprep.mubr.f32.mxu0 0.0
          %647 = vmatmul.mubr.f32.gmra.mxu0 %v572
          %v648 = vpop.f32.mrf.mxu0
          %v649 = vadd.f32 %v566, %v648
          %v650 = vpop.f32.mrf.mxu0
          %651 = vdwg.mxu0
          %v652 = vld [vmem:[#allocation4] sm:$0xff]
          %v653 = vld [vmem:[#allocation4 + $0x8] sm:$0xff]
          %vm654 = vcmask 64512
          %v655 = vsel %vm654, %v644, -inf
          %656 = vmax.xlane.f32.xlu0 %v655
          %v657 = vpop.xlane.xlu0 %656
          %v658 = vsel %vm654, %v649, -inf
          %659 = vmax.xlane.f32.xlu0 %v658
          %v660 = vpop.xlane.xlu0 %659
          %v661 = vmax.f32 %v652, %v657
          %v662 = vmax.f32 %v653, %v660
          %v663 = vsub.f32 %v652, %v661
          %v664 = vsub.f32 %v653, %v662
          %v665 = vmul.f32 %v663, 1.442695
          %v666 = vpow.pop %v665
          %v667 = vmul.f32 %v664, 1.442695
          %v668 = vpow.pop %v667
          %670 = vset.pattern.permute.xlu0 0
          %671 = vperm.xlu0 %670, %v661
          %v672 = vpop.permute.xlu0 %671
          %675 = vset.pattern.permute.xlu0 0
          %676 = vperm.xlu0 %675, %v662
          %v677 = vpop.permute.xlu0 %676
          %v679 = vsub.f32 %v644, %v672
          %v680 = vsub.f32 %v649, %v677
          %v681 = vmul.f32 %v679, 1.442695
          %v682 = vpow.pop %v681
          %v683 = vmul.f32 %v680, 1.442695
          %v684 = vpow.pop %v683
          %v685 = vld [vmem:[#allocation5] sm:$0xff]
          %v686 = vld [vmem:[#allocation5 + $0x8] sm:$0xff]
          %v687 = vmul.f32 %v666, %v685
          %v688 = vmul.f32 %v668, %v686
          %v689 = vsel %vm654, %v682, 0.0
          %690 = vadd.xlane.f32.xlu0 %v689
          %v691 = vpop.xlane.xlu0 %690
          %v692 = vsel %vm654, %v684, 0.0
          %693 = vadd.xlane.f32.xlu0 %v692
          %v694 = vpop.xlane.xlu0 %693
          %v695 = vadd.f32 %v687, %v691
          %v696 = vadd.f32 %v688, %v694
          %697 = vst.msk [vmem:[#allocation5] sm:$0xff] %vm509, %v695
          %698 = vst.msk [vmem:[#allocation5 + $0x8] sm:$0xff] %vm509, %v696
          %v700 = vsel %vm654, %v682, 0
          %v703 = vsel %vm654, %v684, 0
          %705 = vmatprep.subr.mxu0 0.0
          %706 = vmatpush1.msra.mxu0 0.0
          %707 = vmatprep.subr.mxu0 0.0
          %708 = vmatpush1.msra.mxu0 0.0
          %709 = vmatprep.subr.mxu0 0.0
          %710 = vmatpush1.msra.mxu0 0.0
          %711 = vmatprep.subr.mxu0 0.0
          %712 = vmatpush1.msra.mxu0 0.0
          %713 = vmatprep.subr.mxu0 0.0
          %714 = vmatpush1.msra.mxu0 0.0
          %715 = vmatprep.subr.mxu0 0.0
          %716 = vmatpush1.msra.mxu0 0.0
          %717 = vmatprep.subr.mxu0 0.0
          %718 = vmatpush1.msra.mxu0 0.0
          %719 = vmatprep.subr.mxu0 0.0
          %720 = vmatpush1.msra.mxu0 0.0
          %721 = vmatprep.subr.mxu0 0.0
          %722 = vmatpush1.msra.mxu0 0.0
          %723 = vmatprep.subr.mxu0 0.0
          %724 = vmatpush1.msra.mxu0 0.0
          %725 = vmatprep.subr.mxu0 0.0
          %726 = vmatpush1.msra.mxu0 0.0
          %727 = vmatprep.subr.mxu0 0.0
          %728 = vmatpush1.msra.mxu0 0.0
          %729 = vmatprep.subr.mxu0 0.0
          %730 = vmatpush1.msra.mxu0 0.0
          %731 = vmatprep.subr.mxu0 0.0
          %732 = vmatpush1.msra.mxu0 0.0
          %733 = vmatprep.subr.mxu0 0.0
          %734 = vmatpush1.msra.mxu0 0.0
          %735 = vmatprep.subr.mxu0 0.0
          %736 = vmatpush1.msra.mxu0 %v549
          %737 = vmatprep.subr.mxu0 0.0
          %738 = vmatpush2.msra.mxu0 0.0
          %739 = vmatprep.subr.mxu0 0.0
          %740 = vmatpush2.msra.mxu0 0.0
          %741 = vmatprep.subr.mxu0 0.0
          %742 = vmatpush2.msra.mxu0 0.0
          %743 = vmatprep.subr.mxu0 0.0
          %744 = vmatpush2.msra.mxu0 0.0
          %745 = vmatprep.subr.mxu0 0.0
          %746 = vmatpush2.msra.mxu0 0.0
          %747 = vmatprep.subr.mxu0 0.0
          %748 = vmatpush2.msra.mxu0 0.0
          %749 = vmatprep.subr.mxu0 0.0
          %750 = vmatpush2.msra.mxu0 0.0
          %751 = vmatprep.subr.mxu0 0.0
          %752 = vmatpush2.msra.mxu0 0.0
          %753 = vmatprep.subr.mxu0 0.0
          %754 = vmatpush2.msra.mxu0 0.0
          %755 = vmatprep.subr.mxu0 0.0
          %756 = vmatpush2.msra.mxu0 0.0
          %757 = vmatprep.subr.mxu0 0.0
          %758 = vmatpush2.msra.mxu0 0.0
          %759 = vmatprep.subr.mxu0 0.0
          %760 = vmatpush2.msra.mxu0 0.0
          %761 = vmatprep.subr.mxu0 0.0
          %762 = vmatpush2.msra.mxu0 0.0
          %763 = vmatprep.subr.mxu0 0.0
          %764 = vmatpush2.msra.mxu0 0.0
          %765 = vmatprep.subr.mxu0 0.0
          %766 = vmatpush2.msra.mxu0 0.0
          %767 = vmatprep.subr.mxu0 0.0
          %768 = vmatpush2.msra.mxu0 0.0
          %769 = vmatprep.mubr.f32.mxu0 0.0
          %770 = vmatmul.mubr.f32.gmra.mxu0 %v700
          %v771 = vpop.f32.mrf.mxu0
          %v772 = vadd.f32 0.0, %v771
          %v773 = vpop.f32.mrf.mxu0
          %774 = vmatprep.mubr.f32.mxu0 0.0
          %775 = vmatmul.mubr.f32.gmra.mxu0 %v703
          %v776 = vpop.f32.mrf.mxu0
          %v777 = vadd.f32 0.0, %v776
          %v778 = vpop.f32.mrf.mxu0
          %779 = vdwg.mxu0
          %v780 = vld [vmem:[#allocation6] sm:$0xff]
          %v781 = vld [vmem:[#allocation6 + $0x8] sm:$0xff]
          %783 = vset.pattern.permute.xlu0 0
          %784 = vperm.xlu0 %783, %v666
          %v785 = vpop.permute.xlu0 %784
          %788 = vset.pattern.permute.xlu0 0
          %789 = vperm.xlu0 %788, %v668
          %v790 = vpop.permute.xlu0 %789
          %v792 = vmul.f32 %v785, %v780
          %v793 = vmul.f32 %v790, %v781
          %v794 = vadd.f32 %v792, %v772
          %v795 = vadd.f32 %v793, %v777
          %796 = vst.msk [vmem:[#allocation6] sm:$0xff] %vm567, %v794
          %797 = vst.msk [vmem:[#allocation6 + $0x8] sm:$0xff] %vm567, %v795
          %798 = vst.msk [vmem:[#allocation4] sm:$0xff] %vm509, %v661
          %799 = vst.msk [vmem:[#allocation4 + $0x8] sm:$0xff] %vm509, %v662
          %800 = vrot.lane.b32.xlu0 %v503, 96
          %v801 = vpop.permute.xlu0 %800
          %802 = vrot.lane.b32.xlu0 %v504, 96
          %v803 = vpop.permute.xlu0 %802
          %804 = vrot.lane.b32.xlu0 %v547, 96
          %v805 = vpop.permute.xlu0 %804
          %v806 = vsel %vm567, %v801, 0
          %v808 = vsel %vm567, %v803, 0
          %v810 = vsel %vm567, %v805, 0
          %812 = vmatprep.subr.mxu0 0.0
          %813 = vmatpush1.xpose.msra.mxu0 0.0
          %814 = vmatprep.subr.mxu0 0.0
          %815 = vmatpush1.xpose.msra.mxu0 0.0
          %816 = vmatprep.subr.mxu0 0.0
          %817 = vmatpush1.xpose.msra.mxu0 0.0
          %818 = vmatprep.subr.mxu0 0.0
          %819 = vmatpush1.xpose.msra.mxu0 0.0
          %820 = vmatprep.subr.mxu0 0.0
          %821 = vmatpush1.xpose.msra.mxu0 0.0
          %822 = vmatprep.subr.mxu0 0.0
          %823 = vmatpush1.xpose.msra.mxu0 0.0
          %824 = vmatprep.subr.mxu0 0.0
          %825 = vmatpush1.xpose.msra.mxu0 0.0
          %826 = vmatprep.subr.mxu0 0.0
          %827 = vmatpush1.xpose.msra.mxu0 0.0
          %828 = vmatprep.subr.mxu0 0.0
          %829 = vmatpush1.xpose.msra.mxu0 0.0
          %830 = vmatprep.subr.mxu0 0.0
          %831 = vmatpush1.xpose.msra.mxu0 0.0
          %832 = vmatprep.subr.mxu0 0.0
          %833 = vmatpush1.xpose.msra.mxu0 0.0
          %834 = vmatprep.subr.mxu0 0.0
          %835 = vmatpush1.xpose.msra.mxu0 0.0
          %836 = vmatprep.subr.mxu0 0.0
          %837 = vmatpush1.xpose.msra.mxu0 0.0
          %838 = vmatprep.subr.mxu0 0.0
          %839 = vmatpush1.xpose.msra.mxu0 0.0
          %840 = vmatprep.subr.mxu0 0.0
          %841 = vmatpush1.xpose.msra.mxu0 0.0
          %842 = vmatprep.subr.mxu0 0.0
          %843 = vmatpush1.xpose.msra.mxu0 %v810
          %844 = vmatprep.subr.mxu0 0.0
          %845 = vmatpush2.xpose.msra.mxu0 0.0
          %846 = vmatprep.subr.mxu0 0.0
          %847 = vmatpush2.xpose.msra.mxu0 0.0
          %848 = vmatprep.subr.mxu0 0.0
          %849 = vmatpush2.xpose.msra.mxu0 0.0
          %850 = vmatprep.subr.mxu0 0.0
          %851 = vmatpush2.xpose.msra.mxu0 0.0
          %852 = vmatprep.subr.mxu0 0.0
          %853 = vmatpush2.xpose.msra.mxu0 0.0
          %854 = vmatprep.subr.mxu0 0.0
          %855 = vmatpush2.xpose.msra.mxu0 0.0
          %856 = vmatprep.subr.mxu0 0.0
          %857 = vmatpush2.xpose.msra.mxu0 0.0
          %858 = vmatprep.subr.mxu0 0.0
          %859 = vmatpush2.xpose.msra.mxu0 0.0
          %860 = vmatprep.subr.mxu0 0.0
          %861 = vmatpush2.xpose.msra.mxu0 0.0
          %862 = vmatprep.subr.mxu0 0.0
          %863 = vmatpush2.xpose.msra.mxu0 0.0
          %864 = vmatprep.subr.mxu0 0.0
          %865 = vmatpush2.xpose.msra.mxu0 0.0
          %866 = vmatprep.subr.mxu0 0.0
          %867 = vmatpush2.xpose.msra.mxu0 0.0
          %868 = vmatprep.subr.mxu0 0.0
          %869 = vmatpush2.xpose.msra.mxu0 0.0
          %870 = vmatprep.subr.mxu0 0.0
          %871 = vmatpush2.xpose.msra.mxu0 0.0
          %872 = vmatprep.subr.mxu0 0.0
          %873 = vmatpush2.xpose.msra.mxu0 0.0
          %874 = vmatprep.subr.mxu0 0.0
          %875 = vmatpush2.xpose.msra.mxu0 0.0
          %876 = vmatprep.mubr.f32.mxu0 0.0
          %877 = vmatmul.mubr.f32.gmra.mxu0 %v806
          %v878 = vpop.f32.mrf.mxu0
          %v879 = vadd.f32 %v565, %v878
          %v880 = vpop.f32.mrf.mxu0
          %881 = vmatprep.mubr.f32.mxu0 0.0
          %882 = vmatmul.mubr.f32.gmra.mxu0 %v808
          %v883 = vpop.f32.mrf.mxu0
          %v884 = vadd.f32 %v566, %v883
          %v885 = vpop.f32.mrf.mxu0
          %886 = vdwg.mxu0
          %s887 = scalar_lea.vmem [#allocation4], 16
          %v888 = vld [vmem:[%s887] sm:$0xff]
          %v889 = vld [vmem:[%s887 + $0x8] sm:$0xff]
          %v890 = vsel %vm654, %v879, -inf
          %891 = vmax.xlane.f32.xlu0 %v890
          %v892 = vpop.xlane.xlu0 %891
          %v893 = vsel %vm654, %v884, -inf
          %894 = vmax.xlane.f32.xlu0 %v893
          %v895 = vpop.xlane.xlu0 %894
          %v896 = vmax.f32 %v888, %v892
          %v897 = vmax.f32 %v889, %v895
          %v898 = vsub.f32 %v888, %v896
          %v899 = vsub.f32 %v889, %v897
          %v900 = vmul.f32 %v898, 1.442695
          %v901 = vpow.pop %v900
          %v902 = vmul.f32 %v899, 1.442695
          %v903 = vpow.pop %v902
          %905 = vset.pattern.permute.xlu0 0
          %906 = vperm.xlu0 %905, %v896
          %v907 = vpop.permute.xlu0 %906
          %910 = vset.pattern.permute.xlu0 0
          %911 = vperm.xlu0 %910, %v897
          %v912 = vpop.permute.xlu0 %911
          %v914 = vsub.f32 %v879, %v907
          %v915 = vsub.f32 %v884, %v912
          %v916 = vmul.f32 %v914, 1.442695
          %v917 = vpow.pop %v916
          %v918 = vmul.f32 %v915, 1.442695
          %v919 = vpow.pop %v918
          %s920 = scalar_lea.vmem [#allocation5], 16
          %v921 = vld [vmem:[%s920] sm:$0xff]
          %v922 = vld [vmem:[%s920 + $0x8] sm:$0xff]
          %v923 = vmul.f32 %v901, %v921
          %v924 = vmul.f32 %v903, %v922
          %v925 = vsel %vm654, %v917, 0.0
          %926 = vadd.xlane.f32.xlu0 %v925
          %v927 = vpop.xlane.xlu0 %926
          %v928 = vsel %vm654, %v919, 0.0
          %929 = vadd.xlane.f32.xlu0 %v928
          %v930 = vpop.xlane.xlu0 %929
          %v931 = vadd.f32 %v923, %v927
          %v932 = vadd.f32 %v924, %v930
          %933 = vst.msk [vmem:[%s920] sm:$0xff] %vm509, %v931
          %934 = vst.msk [vmem:[%s920 + $0x8] sm:$0xff] %vm509, %v932
          %936 = vrot.lane.b32.xlu0 %v549, 96
          %v937 = vpop.permute.xlu0 %936
          %v940 = vsel %vm654, %v917, 0
          %v943 = vsel %vm654, %v919, 0
          %945 = vmatprep.subr.mxu0 0.0
          %946 = vmatpush1.msra.mxu0 0.0
          %947 = vmatprep.subr.mxu0 0.0
          %948 = vmatpush1.msra.mxu0 0.0
          %949 = vmatprep.subr.mxu0 0.0
          %950 = vmatpush1.msra.mxu0 0.0
          %951 = vmatprep.subr.mxu0 0.0
          %952 = vmatpush1.msra.mxu0 0.0
          %953 = vmatprep.subr.mxu0 0.0
          %954 = vmatpush1.msra.mxu0 0.0
          %955 = vmatprep.subr.mxu0 0.0
          %956 = vmatpush1.msra.mxu0 0.0
          %957 = vmatprep.subr.mxu0 0.0
          %958 = vmatpush1.msra.mxu0 0.0
          %959 = vmatprep.subr.mxu0 0.0
          %960 = vmatpush1.msra.mxu0 0.0
          %961 = vmatprep.subr.mxu0 0.0
          %962 = vmatpush1.msra.mxu0 0.0
          %963 = vmatprep.subr.mxu0 0.0
          %964 = vmatpush1.msra.mxu0 0.0
          %965 = vmatprep.subr.mxu0 0.0
          %966 = vmatpush1.msra.mxu0 0.0
          %967 = vmatprep.subr.mxu0 0.0
          %968 = vmatpush1.msra.mxu0 0.0
          %969 = vmatprep.subr.mxu0 0.0
          %970 = vmatpush1.msra.mxu0 0.0
          %971 = vmatprep.subr.mxu0 0.0
          %972 = vmatpush1.msra.mxu0 0.0
          %973 = vmatprep.subr.mxu0 0.0
          %974 = vmatpush1.msra.mxu0 0.0
          %975 = vmatprep.subr.mxu0 0.0
          %976 = vmatpush1.msra.mxu0 %v937
          %977 = vmatprep.subr.mxu0 0.0
          %978 = vmatpush2.msra.mxu0 0.0
          %979 = vmatprep.subr.mxu0 0.0
          %980 = vmatpush2.msra.mxu0 0.0
          %981 = vmatprep.subr.mxu0 0.0
          %982 = vmatpush2.msra.mxu0 0.0
          %983 = vmatprep.subr.mxu0 0.0
          %984 = vmatpush2.msra.mxu0 0.0
          %985 = vmatprep.subr.mxu0 0.0
          %986 = vmatpush2.msra.mxu0 0.0
          %987 = vmatprep.subr.mxu0 0.0
          %988 = vmatpush2.msra.mxu0 0.0
          %989 = vmatprep.subr.mxu0 0.0
          %990 = vmatpush2.msra.mxu0 0.0
          %991 = vmatprep.subr.mxu0 0.0
          %992 = vmatpush2.msra.mxu0 0.0
          %993 = vmatprep.subr.mxu0 0.0
          %994 = vmatpush2.msra.mxu0 0.0
          %995 = vmatprep.subr.mxu0 0.0
          %996 = vmatpush2.msra.mxu0 0.0
          %997 = vmatprep.subr.mxu0 0.0
          %998 = vmatpush2.msra.mxu0 0.0
          %999 = vmatprep.subr.mxu0 0.0
          %1000 = vmatpush2.msra.mxu0 0.0
          %1001 = vmatprep.subr.mxu0 0.0
          %1002 = vmatpush2.msra.mxu0 0.0
          %1003 = vmatprep.subr.mxu0 0.0
          %1004 = vmatpush2.msra.mxu0 0.0
          %1005 = vmatprep.subr.mxu0 0.0
          %1006 = vmatpush2.msra.mxu0 0.0
          %1007 = vmatprep.subr.mxu0 0.0
          %1008 = vmatpush2.msra.mxu0 0.0
          %1009 = vmatprep.mubr.f32.mxu0 0.0
          %1010 = vmatmul.mubr.f32.gmra.mxu0 %v940
          %v1011 = vpop.f32.mrf.mxu0
          %v1012 = vadd.f32 0.0, %v1011
          %v1013 = vpop.f32.mrf.mxu0
          %1014 = vmatprep.mubr.f32.mxu0 0.0
          %1015 = vmatmul.mubr.f32.gmra.mxu0 %v943
          %v1016 = vpop.f32.mrf.mxu0
          %v1017 = vadd.f32 0.0, %v1016
          %v1018 = vpop.f32.mrf.mxu0
          %1019 = vdwg.mxu0
          %v1020 = vld [vmem:[#allocation6] sm:$0xff]
          %v1021 = vld [vmem:[#allocation6 + $0x8] sm:$0xff]
          %1023 = vset.pattern.permute.xlu0 0
          %1024 = vperm.xlu0 %1023, %v901
          %v1025 = vpop.permute.xlu0 %1024
          %1028 = vset.pattern.permute.xlu0 0
          %1029 = vperm.xlu0 %1028, %v903
          %v1030 = vpop.permute.xlu0 %1029
          %v1032 = vmul.f32 %v1025, %v1020
          %v1033 = vmul.f32 %v1030, %v1021
          %1036 = vrot.lane.b32.xlu0 %v1012, 32
          %v1037 = vpop.permute.xlu0 %1036
          %1038 = vrot.lane.b32.xlu0 %v1017, 32
          %v1039 = vpop.permute.xlu0 %1038
          %v1042 = vadd.f32 %v1032, %v1037
          %v1043 = vadd.f32 %v1033, %v1039
          %vm1044 = vcmask 523520
          %1045 = vst.msk [vmem:[#allocation6] sm:$0xff] %vm1044, %v1042
          %1046 = vst.msk [vmem:[#allocation6 + $0x8] sm:$0xff] %vm1044, %v1043
          %1047 = vst.msk [vmem:[%s887] sm:$0xff] %vm509, %v896
          %1048 = vst.msk [vmem:[%s887 + $0x8] sm:$0xff] %vm509, %v897
          %1049 = vrot.lane.b32.xlu0 %v503, 64
          %v1050 = vpop.permute.xlu0 %1049
          %1051 = vrot.lane.b32.xlu0 %v504, 64
          %v1052 = vpop.permute.xlu0 %1051
          %1053 = vrot.lane.b32.xlu0 %v547, 64
          %v1054 = vpop.permute.xlu0 %1053
          %v1055 = vsel %vm567, %v1050, 0
          %v1057 = vsel %vm567, %v1052, 0
          %v1059 = vsel %vm567, %v1054, 0
          %1061 = vmatprep.subr.mxu0 0.0
          %1062 = vmatpush1.xpose.msra.mxu0 0.0
          %1063 = vmatprep.subr.mxu0 0.0
          %1064 = vmatpush1.xpose.msra.mxu0 0.0
          %1065 = vmatprep.subr.mxu0 0.0
          %1066 = vmatpush1.xpose.msra.mxu0 0.0
          %1067 = vmatprep.subr.mxu0 0.0
          %1068 = vmatpush1.xpose.msra.mxu0 0.0
          %1069 = vmatprep.subr.mxu0 0.0
          %1070 = vmatpush1.xpose.msra.mxu0 0.0
          %1071 = vmatprep.subr.mxu0 0.0
          %1072 = vmatpush1.xpose.msra.mxu0 0.0
          %1073 = vmatprep.subr.mxu0 0.0
          %1074 = vmatpush1.xpose.msra.mxu0 0.0
          %1075 = vmatprep.subr.mxu0 0.0
          %1076 = vmatpush1.xpose.msra.mxu0 0.0
          %1077 = vmatprep.subr.mxu0 0.0
          %1078 = vmatpush1.xpose.msra.mxu0 0.0
          %1079 = vmatprep.subr.mxu0 0.0
          %1080 = vmatpush1.xpose.msra.mxu0 0.0
          %1081 = vmatprep.subr.mxu0 0.0
          %1082 = vmatpush1.xpose.msra.mxu0 0.0
          %1083 = vmatprep.subr.mxu0 0.0
          %1084 = vmatpush1.xpose.msra.mxu0 0.0
          %1085 = vmatprep.subr.mxu0 0.0
          %1086 = vmatpush1.xpose.msra.mxu0 0.0
          %1087 = vmatprep.subr.mxu0 0.0
          %1088 = vmatpush1.xpose.msra.mxu0 0.0
          %1089 = vmatprep.subr.mxu0 0.0
          %1090 = vmatpush1.xpose.msra.mxu0 0.0
          %1091 = vmatprep.subr.mxu0 0.0
          %1092 = vmatpush1.xpose.msra.mxu0 %v1059
          %1093 = vmatprep.subr.mxu0 0.0
          %1094 = vmatpush2.xpose.msra.mxu0 0.0
          %1095 = vmatprep.subr.mxu0 0.0
          %1096 = vmatpush2.xpose.msra.mxu0 0.0
          %1097 = vmatprep.subr.mxu0 0.0
          %1098 = vmatpush2.xpose.msra.mxu0 0.0
          %1099 = vmatprep.subr.mxu0 0.0
          %1100 = vmatpush2.xpose.msra.mxu0 0.0
          %1101 = vmatprep.subr.mxu0 0.0
          %1102 = vmatpush2.xpose.msra.mxu0 0.0
          %1103 = vmatprep.subr.mxu0 0.0
          %1104 = vmatpush2.xpose.msra.mxu0 0.0
          %1105 = vmatprep.subr.mxu0 0.0
          %1106 = vmatpush2.xpose.msra.mxu0 0.0
          %1107 = vmatprep.subr.mxu0 0.0
          %1108 = vmatpush2.xpose.msra.mxu0 0.0
          %1109 = vmatprep.subr.mxu0 0.0
          %1110 = vmatpush2.xpose.msra.mxu0 0.0
          %1111 = vmatprep.subr.mxu0 0.0
          %1112 = vmatpush2.xpose.msra.mxu0 0.0
          %1113 = vmatprep.subr.mxu0 0.0
          %1114 = vmatpush2.xpose.msra.mxu0 0.0
          %1115 = vmatprep.subr.mxu0 0.0
          %1116 = vmatpush2.xpose.msra.mxu0 0.0
          %1117 = vmatprep.subr.mxu0 0.0
          %1118 = vmatpush2.xpose.msra.mxu0 0.0
          %1119 = vmatprep.subr.mxu0 0.0
          %1120 = vmatpush2.xpose.msra.mxu0 0.0
          %1121 = vmatprep.subr.mxu0 0.0
          %1122 = vmatpush2.xpose.msra.mxu0 0.0
          %1123 = vmatprep.subr.mxu0 0.0
          %1124 = vmatpush2.xpose.msra.mxu0 0.0
          %1125 = vmatprep.mubr.f32.mxu0 0.0
          %1126 = vmatmul.mubr.f32.gmra.mxu0 %v1055
          %v1127 = vpop.f32.mrf.mxu0
          %v1128 = vadd.f32 %v565, %v1127
          %v1129 = vpop.f32.mrf.mxu0
          %1130 = vmatprep.mubr.f32.mxu0 0.0
          %1131 = vmatmul.mubr.f32.gmra.mxu0 %v1057
          %v1132 = vpop.f32.mrf.mxu0
          %v1133 = vadd.f32 %v566, %v1132
          %v1134 = vpop.f32.mrf.mxu0
          %1135 = vdwg.mxu0
          %s1136 = scalar_lea.vmem [#allocation4], 32
          %v1137 = vld [vmem:[%s1136] sm:$0xff]
          %v1138 = vld [vmem:[%s1136 + $0x8] sm:$0xff]
          %v1139 = vsel %vm654, %v1128, -inf
          %1140 = vmax.xlane.f32.xlu0 %v1139
          %v1141 = vpop.xlane.xlu0 %1140
          %v1142 = vsel %vm654, %v1133, -inf
          %1143 = vmax.xlane.f32.xlu0 %v1142
          %v1144 = vpop.xlane.xlu0 %1143
          %v1145 = vmax.f32 %v1137, %v1141
          %v1146 = vmax.f32 %v1138, %v1144
          %v1147 = vsub.f32 %v1137, %v1145
          %v1148 = vsub.f32 %v1138, %v1146
          %v1149 = vmul.f32 %v1147, 1.442695
          %v1150 = vpow.pop %v1149
          %v1151 = vmul.f32 %v1148, 1.442695
          %v1152 = vpow.pop %v1151
          %1154 = vset.pattern.permute.xlu0 0
          %1155 = vperm.xlu0 %1154, %v1145
          %v1156 = vpop.permute.xlu0 %1155
          %1159 = vset.pattern.permute.xlu0 0
          %1160 = vperm.xlu0 %1159, %v1146
          %v1161 = vpop.permute.xlu0 %1160
          %v1163 = vsub.f32 %v1128, %v1156
          %v1164 = vsub.f32 %v1133, %v1161
          %v1165 = vmul.f32 %v1163, 1.442695
          %v1166 = vpow.pop %v1165
          %v1167 = vmul.f32 %v1164, 1.442695
          %v1168 = vpow.pop %v1167
          %s1169 = scalar_lea.vmem [#allocation5], 32
          %v1170 = vld [vmem:[%s1169] sm:$0xff]
          %v1171 = vld [vmem:[%s1169 + $0x8] sm:$0xff]
          %v1172 = vmul.f32 %v1150, %v1170
          %v1173 = vmul.f32 %v1152, %v1171
          %v1174 = vsel %vm654, %v1166, 0.0
          %1175 = vadd.xlane.f32.xlu0 %v1174
          %v1176 = vpop.xlane.xlu0 %1175
          %v1177 = vsel %vm654, %v1168, 0.0
          %1178 = vadd.xlane.f32.xlu0 %v1177
          %v1179 = vpop.xlane.xlu0 %1178
          %v1180 = vadd.f32 %v1172, %v1176
          %v1181 = vadd.f32 %v1173, %v1179
          %1182 = vst.msk [vmem:[%s1169] sm:$0xff] %vm509, %v1180
          %1183 = vst.msk [vmem:[%s1169 + $0x8] sm:$0xff] %vm509, %v1181
          %1184 = vrot.lane.b32.xlu0 %v549, 64
          %v1185 = vpop.permute.xlu0 %1184
          %v1188 = vsel %vm654, %v1166, 0
          %v1191 = vsel %vm654, %v1168, 0
          %1193 = vmatprep.subr.mxu0 0.0
          %1194 = vmatpush1.msra.mxu0 0.0
          %1195 = vmatprep.subr.mxu0 0.0
          %1196 = vmatpush1.msra.mxu0 0.0
          %1197 = vmatprep.subr.mxu0 0.0
          %1198 = vmatpush1.msra.mxu0 0.0
          %1199 = vmatprep.subr.mxu0 0.0
          %1200 = vmatpush1.msra.mxu0 0.0
          %1201 = vmatprep.subr.mxu0 0.0
          %1202 = vmatpush1.msra.mxu0 0.0
          %1203 = vmatprep.subr.mxu0 0.0
          %1204 = vmatpush1.msra.mxu0 0.0
          %1205 = vmatprep.subr.mxu0 0.0
          %1206 = vmatpush1.msra.mxu0 0.0
          %1207 = vmatprep.subr.mxu0 0.0
          %1208 = vmatpush1.msra.mxu0 0.0
          %1209 = vmatprep.subr.mxu0 0.0
          %1210 = vmatpush1.msra.mxu0 0.0
          %1211 = vmatprep.subr.mxu0 0.0
          %1212 = vmatpush1.msra.mxu0 0.0
          %1213 = vmatprep.subr.mxu0 0.0
          %1214 = vmatpush1.msra.mxu0 0.0
          %1215 = vmatprep.subr.mxu0 0.0
          %1216 = vmatpush1.msra.mxu0 0.0
          %1217 = vmatprep.subr.mxu0 0.0
          %1218 = vmatpush1.msra.mxu0 0.0
          %1219 = vmatprep.subr.mxu0 0.0
          %1220 = vmatpush1.msra.mxu0 0.0
          %1221 = vmatprep.subr.mxu0 0.0
          %1222 = vmatpush1.msra.mxu0 0.0
          %1223 = vmatprep.subr.mxu0 0.0
          %1224 = vmatpush1.msra.mxu0 %v1185
          %1225 = vmatprep.subr.mxu0 0.0
          %1226 = vmatpush2.msra.mxu0 0.0
          %1227 = vmatprep.subr.mxu0 0.0
          %1228 = vmatpush2.msra.mxu0 0.0
          %1229 = vmatprep.subr.mxu0 0.0
          %1230 = vmatpush2.msra.mxu0 0.0
          %1231 = vmatprep.subr.mxu0 0.0
          %1232 = vmatpush2.msra.mxu0 0.0
          %1233 = vmatprep.subr.mxu0 0.0
          %1234 = vmatpush2.msra.mxu0 0.0
          %1235 = vmatprep.subr.mxu0 0.0
          %1236 = vmatpush2.msra.mxu0 0.0
          %1237 = vmatprep.subr.mxu0 0.0
          %1238 = vmatpush2.msra.mxu0 0.0
          %1239 = vmatprep.subr.mxu0 0.0
          %1240 = vmatpush2.msra.mxu0 0.0
          %1241 = vmatprep.subr.mxu0 0.0
          %1242 = vmatpush2.msra.mxu0 0.0
          %1243 = vmatprep.subr.mxu0 0.0
          %1244 = vmatpush2.msra.mxu0 0.0
          %1245 = vmatprep.subr.mxu0 0.0
          %1246 = vmatpush2.msra.mxu0 0.0
          %1247 = vmatprep.subr.mxu0 0.0
          %1248 = vmatpush2.msra.mxu0 0.0
          %1249 = vmatprep.subr.mxu0 0.0
          %1250 = vmatpush2.msra.mxu0 0.0
          %1251 = vmatprep.subr.mxu0 0.0
          %1252 = vmatpush2.msra.mxu0 0.0
          %1253 = vmatprep.subr.mxu0 0.0
          %1254 = vmatpush2.msra.mxu0 0.0
          %1255 = vmatprep.subr.mxu0 0.0
          %1256 = vmatpush2.msra.mxu0 0.0
          %1257 = vmatprep.mubr.f32.mxu0 0.0
          %1258 = vmatmul.mubr.f32.gmra.mxu0 %v1188
          %v1259 = vpop.f32.mrf.mxu0
          %v1260 = vadd.f32 0.0, %v1259
          %v1261 = vpop.f32.mrf.mxu0
          %1262 = vmatprep.mubr.f32.mxu0 0.0
          %1263 = vmatmul.mubr.f32.gmra.mxu0 %v1191
          %v1264 = vpop.f32.mrf.mxu0
          %v1265 = vadd.f32 0.0, %v1264
          %v1266 = vpop.f32.mrf.mxu0
          %1267 = vdwg.mxu0
          %v1268 = vld [vmem:[#allocation6] sm:$0xff]
          %v1269 = vld [vmem:[#allocation6 + $0x8] sm:$0xff]
          %1271 = vset.pattern.permute.xlu0 0
          %1272 = vperm.xlu0 %1271, %v1150
          %v1273 = vpop.permute.xlu0 %1272
          %1276 = vset.pattern.permute.xlu0 0
          %1277 = vperm.xlu0 %1276, %v1152
          %v1278 = vpop.permute.xlu0 %1277
          %v1280 = vmul.f32 %v1273, %v1268
          %v1281 = vmul.f32 %v1278, %v1269
          %1284 = vrot.lane.b32.xlu0 %v1260, 64
          %v1285 = vpop.permute.xlu0 %1284
          %1286 = vrot.lane.b32.xlu0 %v1265, 64
          %v1287 = vpop.permute.xlu0 %1286
          %v1290 = vadd.f32 %v1280, %v1285
          %v1291 = vadd.f32 %v1281, %v1287
          %vm1292 = vcmask 785920
          %1293 = vst.msk [vmem:[#allocation6] sm:$0xff] %vm1292, %v1290
          %1294 = vst.msk [vmem:[#allocation6 + $0x8] sm:$0xff] %vm1292, %v1291
          %1295 = vst.msk [vmem:[%s1136] sm:$0xff] %vm509, %v1145
          %1296 = vst.msk [vmem:[%s1136 + $0x8] sm:$0xff] %vm509, %v1146
          %1297 = vrot.lane.b32.xlu0 %v503, 32
          %v1298 = vpop.permute.xlu0 %1297
          %1299 = vrot.lane.b32.xlu0 %v504, 32
          %v1300 = vpop.permute.xlu0 %1299
          %1301 = vrot.lane.b32.xlu0 %v547, 32
          %v1302 = vpop.permute.xlu0 %1301
          %v1303 = vsel %vm567, %v1298, 0
          %v1305 = vsel %vm567, %v1300, 0
          %v1307 = vsel %vm567, %v1302, 0
          %1309 = vmatprep.subr.mxu0 0.0
          %1310 = vmatpush1.xpose.msra.mxu0 0.0
          %1311 = vmatprep.subr.mxu0 0.0
          %1312 = vmatpush1.xpose.msra.mxu0 0.0
          %1313 = vmatprep.subr.mxu0 0.0
          %1314 = vmatpush1.xpose.msra.mxu0 0.0
          %1315 = vmatprep.subr.mxu0 0.0
          %1316 = vmatpush1.xpose.msra.mxu0 0.0
          %1317 = vmatprep.subr.mxu0 0.0
          %1318 = vmatpush1.xpose.msra.mxu0 0.0
          %1319 = vmatprep.subr.mxu0 0.0
          %1320 = vmatpush1.xpose.msra.mxu0 0.0
          %1321 = vmatprep.subr.mxu0 0.0
          %1322 = vmatpush1.xpose.msra.mxu0 0.0
          %1323 = vmatprep.subr.mxu0 0.0
          %1324 = vmatpush1.xpose.msra.mxu0 0.0
          %1325 = vmatprep.subr.mxu0 0.0
          %1326 = vmatpush1.xpose.msra.mxu0 0.0
          %1327 = vmatprep.subr.mxu0 0.0
          %1328 = vmatpush1.xpose.msra.mxu0 0.0
          %1329 = vmatprep.subr.mxu0 0.0
          %1330 = vmatpush1.xpose.msra.mxu0 0.0
          %1331 = vmatprep.subr.mxu0 0.0
          %1332 = vmatpush1.xpose.msra.mxu0 0.0
          %1333 = vmatprep.subr.mxu0 0.0
          %1334 = vmatpush1.xpose.msra.mxu0 0.0
          %1335 = vmatprep.subr.mxu0 0.0
          %1336 = vmatpush1.xpose.msra.mxu0 0.0
          %1337 = vmatprep.subr.mxu0 0.0
          %1338 = vmatpush1.xpose.msra.mxu0 0.0
          %1339 = vmatprep.subr.mxu0 0.0
          %1340 = vmatpush1.xpose.msra.mxu0 %v1307
          %1341 = vmatprep.subr.mxu0 0.0
          %1342 = vmatpush2.xpose.msra.mxu0 0.0
          %1343 = vmatprep.subr.mxu0 0.0
          %1344 = vmatpush2.xpose.msra.mxu0 0.0
          %1345 = vmatprep.subr.mxu0 0.0
          %1346 = vmatpush2.xpose.msra.mxu0 0.0
          %1347 = vmatprep.subr.mxu0 0.0
          %1348 = vmatpush2.xpose.msra.mxu0 0.0
          %1349 = vmatprep.subr.mxu0 0.0
          %1350 = vmatpush2.xpose.msra.mxu0 0.0
          %1351 = vmatprep.subr.mxu0 0.0
          %1352 = vmatpush2.xpose.msra.mxu0 0.0
          %1353 = vmatprep.subr.mxu0 0.0
          %1354 = vmatpush2.xpose.msra.mxu0 0.0
          %1355 = vmatprep.subr.mxu0 0.0
          %1356 = vmatpush2.xpose.msra.mxu0 0.0
          %1357 = vmatprep.subr.mxu0 0.0
          %1358 = vmatpush2.xpose.msra.mxu0 0.0
          %1359 = vmatprep.subr.mxu0 0.0
          %1360 = vmatpush2.xpose.msra.mxu0 0.0
          %1361 = vmatprep.subr.mxu0 0.0
          %1362 = vmatpush2.xpose.msra.mxu0 0.0
          %1363 = vmatprep.subr.mxu0 0.0
          %1364 = vmatpush2.xpose.msra.mxu0 0.0
          %1365 = vmatprep.subr.mxu0 0.0
          %1366 = vmatpush2.xpose.msra.mxu0 0.0
          %1367 = vmatprep.subr.mxu0 0.0
          %1368 = vmatpush2.xpose.msra.mxu0 0.0
          %1369 = vmatprep.subr.mxu0 0.0
          %1370 = vmatpush2.xpose.msra.mxu0 0.0
          %1371 = vmatprep.subr.mxu0 0.0
          %1372 = vmatpush2.xpose.msra.mxu0 0.0
          %1373 = vmatprep.mubr.f32.mxu0 0.0
          %1374 = vmatmul.mubr.f32.gmra.mxu0 %v1303
          %v1375 = vpop.f32.mrf.mxu0
          %v1376 = vadd.f32 %v565, %v1375
          %v1377 = vpop.f32.mrf.mxu0
          %1378 = vmatprep.mubr.f32.mxu0 0.0
          %1379 = vmatmul.mubr.f32.gmra.mxu0 %v1305
          %v1380 = vpop.f32.mrf.mxu0
          %v1381 = vadd.f32 %v566, %v1380
          %v1382 = vpop.f32.mrf.mxu0
          %1383 = vdwg.mxu0
          %s1384 = scalar_lea.vmem [#allocation4], 48
          %v1385 = vld [vmem:[%s1384] sm:$0xff]
          %v1386 = vld [vmem:[%s1384 + $0x8] sm:$0xff]
          %v1387 = vsel %vm654, %v1376, -inf
          %1388 = vmax.xlane.f32.xlu0 %v1387
          %v1389 = vpop.xlane.xlu0 %1388
          %v1390 = vsel %vm654, %v1381, -inf
          %1391 = vmax.xlane.f32.xlu0 %v1390
          %v1392 = vpop.xlane.xlu0 %1391
          %v1393 = vmax.f32 %v1385, %v1389
          %v1394 = vmax.f32 %v1386, %v1392
          %v1395 = vsub.f32 %v1385, %v1393
          %v1396 = vsub.f32 %v1386, %v1394
          %v1397 = vmul.f32 %v1395, 1.442695
          %v1398 = vpow.pop %v1397
          %v1399 = vmul.f32 %v1396, 1.442695
          %v1400 = vpow.pop %v1399
          %1402 = vset.pattern.permute.xlu0 0
          %1403 = vperm.xlu0 %1402, %v1393
          %v1404 = vpop.permute.xlu0 %1403
          %1407 = vset.pattern.permute.xlu0 0
          %1408 = vperm.xlu0 %1407, %v1394
          %v1409 = vpop.permute.xlu0 %1408
          %v1411 = vsub.f32 %v1376, %v1404
          %v1412 = vsub.f32 %v1381, %v1409
          %v1413 = vmul.f32 %v1411, 1.442695
          %v1414 = vpow.pop %v1413
          %v1415 = vmul.f32 %v1412, 1.442695
          %v1416 = vpow.pop %v1415
          %s1417 = scalar_lea.vmem [#allocation5], 48
          %v1418 = vld [vmem:[%s1417] sm:$0xff]
          %v1419 = vld [vmem:[%s1417 + $0x8] sm:$0xff]
          %v1420 = vmul.f32 %v1398, %v1418
          %v1421 = vmul.f32 %v1400, %v1419
          %v1422 = vsel %vm654, %v1414, 0.0
          %1423 = vadd.xlane.f32.xlu0 %v1422
          %v1424 = vpop.xlane.xlu0 %1423
          %v1425 = vsel %vm654, %v1416, 0.0
          %1426 = vadd.xlane.f32.xlu0 %v1425
          %v1427 = vpop.xlane.xlu0 %1426
          %v1428 = vadd.f32 %v1420, %v1424
          %v1429 = vadd.f32 %v1421, %v1427
          %1430 = vst.msk [vmem:[%s1417] sm:$0xff] %vm509, %v1428
          %1431 = vst.msk [vmem:[%s1417 + $0x8] sm:$0xff] %vm509, %v1429
          %1432 = vrot.lane.b32.xlu0 %v549, 32
          %v1433 = vpop.permute.xlu0 %1432
          %v1436 = vsel %vm654, %v1414, 0
          %v1439 = vsel %vm654, %v1416, 0
          %1441 = vmatprep.subr.mxu0 0.0
          %1442 = vmatpush1.msra.mxu0 0.0
          %1443 = vmatprep.subr.mxu0 0.0
          %1444 = vmatpush1.msra.mxu0 0.0
          %1445 = vmatprep.subr.mxu0 0.0
          %1446 = vmatpush1.msra.mxu0 0.0
          %1447 = vmatprep.subr.mxu0 0.0
          %1448 = vmatpush1.msra.mxu0 0.0
          %1449 = vmatprep.subr.mxu0 0.0
          %1450 = vmatpush1.msra.mxu0 0.0
          %1451 = vmatprep.subr.mxu0 0.0
          %1452 = vmatpush1.msra.mxu0 0.0
          %1453 = vmatprep.subr.mxu0 0.0
          %1454 = vmatpush1.msra.mxu0 0.0
          %1455 = vmatprep.subr.mxu0 0.0
          %1456 = vmatpush1.msra.mxu0 0.0
          %1457 = vmatprep.subr.mxu0 0.0
          %1458 = vmatpush1.msra.mxu0 0.0
          %1459 = vmatprep.subr.mxu0 0.0
          %1460 = vmatpush1.msra.mxu0 0.0
          %1461 = vmatprep.subr.mxu0 0.0
          %1462 = vmatpush1.msra.mxu0 0.0
          %1463 = vmatprep.subr.mxu0 0.0
          %1464 = vmatpush1.msra.mxu0 0.0
          %1465 = vmatprep.subr.mxu0 0.0
          %1466 = vmatpush1.msra.mxu0 0.0
          %1467 = vmatprep.subr.mxu0 0.0
          %1468 = vmatpush1.msra.mxu0 0.0
          %1469 = vmatprep.subr.mxu0 0.0
          %1470 = vmatpush1.msra.mxu0 0.0
          %1471 = vmatprep.subr.mxu0 0.0
          %1472 = vmatpush1.msra.mxu0 %v1433
          %1473 = vmatprep.subr.mxu0 0.0
          %1474 = vmatpush2.msra.mxu0 0.0
          %1475 = vmatprep.subr.mxu0 0.0
          %1476 = vmatpush2.msra.mxu0 0.0
          %1477 = vmatprep.subr.mxu0 0.0
          %1478 = vmatpush2.msra.mxu0 0.0
          %1479 = vmatprep.subr.mxu0 0.0
          %1480 = vmatpush2.msra.mxu0 0.0
          %1481 = vmatprep.subr.mxu0 0.0
          %1482 = vmatpush2.msra.mxu0 0.0
          %1483 = vmatprep.subr.mxu0 0.0
          %1484 = vmatpush2.msra.mxu0 0.0
          %1485 = vmatprep.subr.mxu0 0.0
          %1486 = vmatpush2.msra.mxu0 0.0
          %1487 = vmatprep.subr.mxu0 0.0
          %1488 = vmatpush2.msra.mxu0 0.0
          %1489 = vmatprep.subr.mxu0 0.0
          %1490 = vmatpush2.msra.mxu0 0.0
          %1491 = vmatprep.subr.mxu0 0.0
          %1492 = vmatpush2.msra.mxu0 0.0
          %1493 = vmatprep.subr.mxu0 0.0
          %1494 = vmatpush2.msra.mxu0 0.0
          %1495 = vmatprep.subr.mxu0 0.0
          %1496 = vmatpush2.msra.mxu0 0.0
          %1497 = vmatprep.subr.mxu0 0.0
          %1498 = vmatpush2.msra.mxu0 0.0
          %1499 = vmatprep.subr.mxu0 0.0
          %1500 = vmatpush2.msra.mxu0 0.0
          %1501 = vmatprep.subr.mxu0 0.0
          %1502 = vmatpush2.msra.mxu0 0.0
          %1503 = vmatprep.subr.mxu0 0.0
          %1504 = vmatpush2.msra.mxu0 0.0
          %1505 = vmatprep.mubr.f32.mxu0 0.0
          %1506 = vmatmul.mubr.f32.gmra.mxu0 %v1436
          %v1507 = vpop.f32.mrf.mxu0
          %v1508 = vadd.f32 0.0, %v1507
          %v1509 = vpop.f32.mrf.mxu0
          %1510 = vmatprep.mubr.f32.mxu0 0.0
          %1511 = vmatmul.mubr.f32.gmra.mxu0 %v1439
          %v1512 = vpop.f32.mrf.mxu0
          %v1513 = vadd.f32 0.0, %v1512
          %v1514 = vpop.f32.mrf.mxu0
          %1515 = vdwg.mxu0
          %v1516 = vld [vmem:[#allocation6] sm:$0xff]
          %v1517 = vld [vmem:[#allocation6 + $0x8] sm:$0xff]
          %1519 = vset.pattern.permute.xlu0 0
          %1520 = vperm.xlu0 %1519, %v1398
          %v1521 = vpop.permute.xlu0 %1520
          %1524 = vset.pattern.permute.xlu0 0
          %1525 = vperm.xlu0 %1524, %v1400
          %v1526 = vpop.permute.xlu0 %1525
          %v1528 = vmul.f32 %v1521, %v1516
          %v1529 = vmul.f32 %v1526, %v1517
          %1532 = vrot.lane.b32.xlu0 %v1508, 96
          %v1533 = vpop.permute.xlu0 %1532
          %1534 = vrot.lane.b32.xlu0 %v1513, 96
          %v1535 = vpop.permute.xlu0 %1534
          %v1538 = vadd.f32 %v1528, %v1533
          %v1539 = vadd.f32 %v1529, %v1535
          %vm1540 = vcmask 1048320
          %1541 = vst.msk [vmem:[#allocation6] sm:$0xff] %vm1540, %v1538
          %1542 = vst.msk [vmem:[#allocation6 + $0x8] sm:$0xff] %vm1540, %v1539
          %1543 = vst.msk [vmem:[%s1384] sm:$0xff] %vm509, %v1393
          %1544 = vst.msk [vmem:[%s1384 + $0x8] sm:$0xff] %vm509, %v1394
        $region57: #{tpu_custom_call.1} parent=39 // loop_footer
          %s544 = sadd.s32 1, %s540
        $region58: #{tpu_custom_call.1} parent=39 // loop_footer_branch
          %539 = sbr.rel target = $region54
        $region59: #{tpu_custom_call.1} parent=39 // loop_exit
          _
        %v1545 = vld [vmem:[#allocation6] sm:$0xff]
        %v1546 = vld [vmem:[#allocation6 + $0x8] sm:$0xff]
        %v1547 = vld [vmem:[#allocation5] sm:$0xff]
        %v1548 = vld [vmem:[#allocation5 + $0x8] sm:$0xff]
        %v1549 = vrcp.pop %v1547
        %v1550 = vrcp.pop %v1548
        %1552 = vset.pattern.permute.xlu0 0
        %1553 = vperm.xlu0 %1552, %v1549
        %v1554 = vpop.permute.xlu0 %1553
        %1557 = vset.pattern.permute.xlu0 0
        %1558 = vperm.xlu0 %1557, %v1550
        %v1559 = vpop.permute.xlu0 %1558
        %v1561 = vmul.f32 %v1545, %v1554
        %v1562 = vmul.f32 %v1546, %v1559
        %vm1563 = vcmask 261120
        %1564 = vst.msk [vmem:[#allocation6] sm:$0xff] %vm1563, %v1561
        %1565 = vst.msk [vmem:[#allocation6 + $0x8] sm:$0xff] %vm1563, %v1562
        %v1566 = vld [vmem:[#allocation6] sm:$0xff]
        %v1567 = vld [vmem:[#allocation6 + $0x8] sm:$0xff]
        %s1568 = scalar_lea.vmem [#allocation5], 16
        %v1569 = vld [vmem:[%s1568] sm:$0xff]
        %v1570 = vld [vmem:[%s1568 + $0x8] sm:$0xff]
        %v1571 = vrcp.pop %v1569
        %v1572 = vrcp.pop %v1570
        %1574 = vset.pattern.permute.xlu0 0
        %1575 = vperm.xlu0 %1574, %v1571
        %v1576 = vpop.permute.xlu0 %1575
        %1579 = vset.pattern.permute.xlu0 0
        %1580 = vperm.xlu0 %1579, %v1572
        %v1581 = vpop.permute.xlu0 %1580
        %v1583 = vmul.f32 %v1566, %v1576
        %v1584 = vmul.f32 %v1567, %v1581
        %vm1585 = vcmask 523520
        %1586 = vst.msk [vmem:[#allocation6] sm:$0xff] %vm1585, %v1583
        %1587 = vst.msk [vmem:[#allocation6 + $0x8] sm:$0xff] %vm1585, %v1584
        %v1588 = vld [vmem:[#allocation6] sm:$0xff]
        %v1589 = vld [vmem:[#allocation6 + $0x8] sm:$0xff]
        %s1590 = scalar_lea.vmem [#allocation5], 32
        %v1591 = vld [vmem:[%s1590] sm:$0xff]
        %v1592 = vld [vmem:[%s1590 + $0x8] sm:$0xff]
        %v1593 = vrcp.pop %v1591
        %v1594 = vrcp.pop %v1592
        %1596 = vset.pattern.permute.xlu0 0
        %1597 = vperm.xlu0 %1596, %v1593
        %v1598 = vpop.permute.xlu0 %1597
        %1601 = vset.pattern.permute.xlu0 0
        %1602 = vperm.xlu0 %1601, %v1594
        %v1603 = vpop.permute.xlu0 %1602
        %v1605 = vmul.f32 %v1588, %v1598
        %v1606 = vmul.f32 %v1589, %v1603
        %vm1607 = vcmask 785920
        %1608 = vst.msk [vmem:[#allocation6] sm:$0xff] %vm1607, %v1605
        %1609 = vst.msk [vmem:[#allocation6 + $0x8] sm:$0xff] %vm1607, %v1606
        %v1610 = vld [vmem:[#allocation6] sm:$0xff]
        %v1611 = vld [vmem:[#allocation6 + $0x8] sm:$0xff]
        %s1612 = scalar_lea.vmem [#allocation5], 48
        %v1613 = vld [vmem:[%s1612] sm:$0xff]
        %v1614 = vld [vmem:[%s1612 + $0x8] sm:$0xff]
        %v1615 = vrcp.pop %v1613
        %v1616 = vrcp.pop %v1614
        %1618 = vset.pattern.permute.xlu0 0
        %1619 = vperm.xlu0 %1618, %v1615
        %v1620 = vpop.permute.xlu0 %1619
        %1623 = vset.pattern.permute.xlu0 0
        %1624 = vperm.xlu0 %1623, %v1616
        %v1625 = vpop.permute.xlu0 %1624
        %v1627 = vmul.f32 %v1610, %v1620
        %v1628 = vmul.f32 %v1611, %v1625
        %vm1629 = vcmask 1048320
        %1630 = vst.msk [vmem:[#allocation6] sm:$0xff] %vm1629, %v1627
        %1631 = vst.msk [vmem:[#allocation6 + $0x8] sm:$0xff] %vm1629, %v1628
        %v1632 = vld [vmem:[#allocation6] sm:$0xff]
        %v1633 = vld [vmem:[#allocation6 + $0x8] sm:$0xff]
        %v1634 = vld [vmem:[#allocation15] sm:$0xff]
        %v1635 = vld [vmem:[#allocation15 + $0x8] sm:$0xff]
        %v1636 = vld [vmem:[#allocation15 + $0x10] sm:$0xff]
        %v1637 = vld [vmem:[#allocation15 + $0x18] sm:$0xff]
        %v1638 = vld [vmem:[#allocation15 + $0x20] sm:$0xff]
        %v1639 = vld [vmem:[#allocation15 + $0x28] sm:$0xff]
        %v1640 = vld [vmem:[#allocation15 + $0x30] sm:$0xff]
        %v1641 = vld [vmem:[#allocation15 + $0x38] sm:$0xff]
        %v1642 = vld [vmem:[#allocation15 + $0x40] sm:$0xff]
        %v1643 = vld [vmem:[#allocation15 + $0x48] sm:$0xff]
        %v1644 = vld [vmem:[#allocation15 + $0x50] sm:$0xff]
        %v1645 = vld [vmem:[#allocation15 + $0x58] sm:$0xff]
        %v1646 = vld [vmem:[#allocation15 + $0x60] sm:$0xff]
        %v1647 = vld [vmem:[#allocation15 + $0x68] sm:$0xff]
        %v1648 = vld [vmem:[#allocation15 + $0x70] sm:$0xff]
        %v1649 = vld [vmem:[#allocation15 + $0x78] sm:$0xff]
        %v1650 = vld [vmem:[%s6] sm:$0x1]
        %v1652 = vlaneseq
        %v1653 = vshrl.u32 %v1652, 7
        %v1654 = vsub.s32 0, %v1653
        %v1655 = vrot.slane %v1650, %v1654
        %1657 = vmatprep.subr.mxu0 0.0
        %1658 = vmatpush1.msra.mxu0 %v1649
        %1659 = vmatprep.subr.mxu0 0.0
        %1660 = vmatpush1.msra.mxu0 %v1648
        %1661 = vmatprep.subr.mxu0 0.0
        %1662 = vmatpush1.msra.mxu0 %v1647
        %1663 = vmatprep.subr.mxu0 0.0
        %1664 = vmatpush1.msra.mxu0 %v1646
        %1665 = vmatprep.subr.mxu0 0.0
        %1666 = vmatpush1.msra.mxu0 %v1645
        %1667 = vmatprep.subr.mxu0 0.0
        %1668 = vmatpush1.msra.mxu0 %v1644
        %1669 = vmatprep.subr.mxu0 0.0
        %1670 = vmatpush1.msra.mxu0 %v1643
        %1671 = vmatprep.subr.mxu0 0.0
        %1672 = vmatpush1.msra.mxu0 %v1642
        %1673 = vmatprep.subr.mxu0 0.0
        %1674 = vmatpush1.msra.mxu0 %v1641
        %1675 = vmatprep.subr.mxu0 0.0
        %1676 = vmatpush1.msra.mxu0 %v1640
        %1677 = vmatprep.subr.mxu0 0.0
        %1678 = vmatpush1.msra.mxu0 %v1639
        %1679 = vmatprep.subr.mxu0 0.0
        %1680 = vmatpush1.msra.mxu0 %v1638
        %1681 = vmatprep.subr.mxu0 0.0
        %1682 = vmatpush1.msra.mxu0 %v1637
        %1683 = vmatprep.subr.mxu0 0.0
        %1684 = vmatpush1.msra.mxu0 %v1636
        %1685 = vmatprep.subr.mxu0 0.0
        %1686 = vmatpush1.msra.mxu0 %v1635
        %1687 = vmatprep.subr.mxu0 0.0
        %1688 = vmatpush1.msra.mxu0 %v1634
        %1689 = vmatprep.subr.mxu0 0.0
        %1690 = vmatpush2.msra.mxu0 0.0
        %1691 = vmatprep.subr.mxu0 0.0
        %1692 = vmatpush2.msra.mxu0 0.0
        %1693 = vmatprep.subr.mxu0 0.0
        %1694 = vmatpush2.msra.mxu0 0.0
        %1695 = vmatprep.subr.mxu0 0.0
        %1696 = vmatpush2.msra.mxu0 0.0
        %1697 = vmatprep.subr.mxu0 0.0
        %1698 = vmatpush2.msra.mxu0 0.0
        %1699 = vmatprep.subr.mxu0 0.0
        %1700 = vmatpush2.msra.mxu0 0.0
        %1701 = vmatprep.subr.mxu0 0.0
        %1702 = vmatpush2.msra.mxu0 0.0
        %1703 = vmatprep.subr.mxu0 0.0
        %1704 = vmatpush2.msra.mxu0 0.0
        %1705 = vmatprep.subr.mxu0 0.0
        %1706 = vmatpush2.msra.mxu0 0.0
        %1707 = vmatprep.subr.mxu0 0.0
        %1708 = vmatpush2.msra.mxu0 0.0
        %1709 = vmatprep.subr.mxu0 0.0
        %1710 = vmatpush2.msra.mxu0 0.0
        %1711 = vmatprep.subr.mxu0 0.0
        %1712 = vmatpush2.msra.mxu0 0.0
        %1713 = vmatprep.subr.mxu0 0.0
        %1714 = vmatpush2.msra.mxu0 0.0
        %1715 = vmatprep.subr.mxu0 0.0
        %1716 = vmatpush2.msra.mxu0 0.0
        %1717 = vmatprep.subr.mxu0 0.0
        %1718 = vmatpush2.msra.mxu0 0.0
        %1719 = vmatprep.subr.mxu0 0.0
        %1720 = vmatpush2.msra.mxu0 0.0
        %1721 = vmatprep.mubr.f32.mxu0 0.0
        %1722 = vmatmul.mubr.f32.gmra.mxu0 %v1632
        %v1723 = vpop.f32.mrf.mxu0
        %v1724 = vadd.f32 %v1655, %v1723
        %v1725 = vpop.f32.mrf.mxu0
        %1726 = vmatprep.mubr.f32.mxu0 0.0
        %1727 = vmatmul.mubr.f32.gmra.mxu0 %v1633
        %v1728 = vpop.f32.mrf.mxu0
        %v1729 = vadd.f32 %v1655, %v1728
        %v1730 = vpop.f32.mrf.mxu0
        %1731 = vdwg.mxu0
        %1732 = vst [vmem:[%s281] sm:$0xff] %v1724
        %1733 = vst [vmem:[%s281 + $0x8] sm:$0xff] %v1729
        %s1734 = sand.u32 %s151, 1
        %s1735 = scalar_lea.sflag [#allocation12], %s1734
        %s1736 = sand.u32 %s151, 1
        %s1737 = smul.addr %s1736, 16
        %s1738 = scalar_lea.vmem [#allocation16], %s1737
        // Predicated region
        $region60: #{tpu_custom_call.1} parent=39 // pred_check
          %p1739 = pneg %p161
        $region61: #{tpu_custom_call.1} parent=39 // pred_check_branch
          %1741 = sbr.rel (%p1739) target = $region63
        $region62: #{tpu_custom_call.1} parent=39 // pred_region
          %s1743 = ssub.s32 256, 256
          %1744 = vsyncadd %s1735, %s1743
          %s1745 = smul.addr %s33, 2
          %s1746 = smul.addr %s1745, 128
          %s1747 = scalar_lea.hbm %s7, %s1746
          %s1748 = sshll.u32 %s1738, 4
          %s1749 = int_to_ptr.vmem [resolvable:$true] %s1748
          %1754 = dma.vmem_to_hbm [thread:$0]  %s1749, 256, %s1747, %s1735, 128, 128, 8
        $region63: #{tpu_custom_call.1} parent=39 // pred_fallthru
          _
      $region40: #{tpu_custom_call.1} parent=5 // pred_fallthru
        _
      %p1755 = scmp.le.s32.totalorder 2, %s28
      // Predicated region
      $region64: #{tpu_custom_call.1} parent=5 // pred_check
        %p1756 = pneg %p1755
      $region65: #{tpu_custom_call.1} parent=5 // pred_check_branch
        %1758 = sbr.rel (%p1756) target = $region67
      $region66: #{tpu_custom_call.1} parent=5 // pred_region
        %s1759 = ssub.s32 %s28, 2
        // Predicated region
        $region68: #{tpu_custom_call.1} parent=66 // pred_check
          %p1760 = pneg %p167
        $region69: #{tpu_custom_call.1} parent=66 // pred_check_branch
          %1762 = sbr.rel (%p1760) target = $region71
        $region70: #{tpu_custom_call.1} parent=66 // pred_region
          %s1763 = sand.u32 %s152, 1
          %s1764 = scalar_lea.sflag [#allocation12], %s1763
          %s1765 = sand.u32 %s152, 1
          %s1766 = smul.addr %s1765, 16
          %s1767 = scalar_lea.vmem [#allocation16], %s1766
          %1768 = dma.done %s1764, 256
        $region71: #{tpu_custom_call.1} parent=66 // pred_fallthru
          _
      $region67: #{tpu_custom_call.1} parent=5 // pred_fallthru
        _
    $region6: #{tpu_custom_call.1} parent=1 // loop_footer
      %s32 = sadd.s32 1, %s28
    $region7: #{tpu_custom_call.1} parent=1 // loop_footer_branch
      %27 = sbr.rel target = $region3
    $region8: #{tpu_custom_call.1} parent=1 // loop_exit
      _
    %1769 = vsyncpa [#allocation11], 1
    %s1770 = scalar_lea.sflag [#allocation11], 1
    %1771 = vsyncpa %s1770, 1
    %1772 = vsyncpa [#allocation14], 1
    %1773 = vsyncpa [#allocation12], 1
    %s1774 = scalar_lea.sflag [#allocation12], 1
    %1775 = vsyncpa %s1774, 1

</llo_original>
